<compile_context>
chip_gen: v6e
topology: v6e:2x2x1
jax: 0.10.0
libtpu: 0.0.40
codegen_flags: <defaults>
</compile_context>

<pallas_src>
import jax
import jax.numpy as jnp
from jax.experimental import pallas as pl
from jax.experimental.pallas import tpu as pltpu

NSUB = 8  # sublane rows of batch handled per grid step (one full f32 vreg row)


def _mlp_kernel(x_ref, pk_ref, w2_ref, b3_ref, o_ref):
    """Fused MLP with feature-major activations (features x lanes).

    x_ref / o_ref blocks: (1, 8, L) -- a sublane+lane dense slab of the batch.
    pk_ref: (64, 4) packed [w1 | b1 | b2 | w3] columns.
    w2_ref: (64, 64) middle-layer weight (the only MXU matmul).
    b3_ref: (1,) SMEM scalar.
    """
    L = x_ref.shape[-1]
    pk = pk_ref[...]                                          # (64, 4)
    # Hoist the lane-broadcasts of the small params out of the 8-row loop
    # (JAX does not CSE broadcast_in_dim).
    w1 = jnp.broadcast_to(pk[:, 0:1], (64, L))
    b1 = jnp.broadcast_to(pk[:, 1:2], (64, L))
    b2 = jnp.broadcast_to(pk[:, 2:3], (64, L))
    w3 = jnp.broadcast_to(pk[:, 3:4], (64, L))
    w2 = w2_ref[...]                                          # (64, 64)
    b3 = b3_ref[0]                                            # scalar (SMEM)

    xb = x_ref[0]                                             # (8, L) dense load
    rows = []
    for r in range(NSUB):                                     # static 8-way unroll
        x_row = xb[r:r + 1, :]                                # (1, L)
        # Layer 1: Linear(1, 64).  K=1 contraction -> VPU broadcast multiply.
        h1 = jnp.maximum(w1 * x_row + b1, 0.0)                # (64, L)
        # Layer 2: Linear(64, 64).  The only real matmul -> MXU, lane-dense N=L.
        h2 = jnp.dot(w2, h1, preferred_element_type=jnp.float32)
        h2 = jnp.maximum(h2 + b2, 0.0)                        # (64, L)
        # Layer 3: Linear(64, 1).  N=1 -> VPU multiply + XLU sublane reduce.
        rows.append(jnp.sum(h2 * w3, axis=0, keepdims=True) + b3)   # (1, L)
    # Single sublane- and lane-dense (8, L) store (unmasked vst).
    o_ref[0] = jnp.concatenate(rows, axis=0).astype(o_ref.dtype)


def regression_model_forward(x, w1, b1, w2, b2, w3, b3, *, tb=8192):
    """x: (B, 1) float32 -> (B, 1) float32.

    Param layouts (PyTorch Linear semantics, weight = (out, in)):
      w1: (64, 1)  b1: (64,)    w2: (64, 64)  b2: (64,)    w3: (1, 64)  b3: (1,)
    """
    B = x.shape[0]
    # Lanes per sublane row: multiple of 128; clamp so tiny batches don't
    # over-pad, default TB = NSUB*L = 8192 to amortize per-grid-step overhead.
    lanes_needed = 128 * pl.cdiv(pl.cdiv(B, NSUB), 128)
    L = max(128, min(max(tb // NSUB, 128), lanes_needed))
    L = 128 * pl.cdiv(L, 128)
    TB = NSUB * L
    G = pl.cdiv(B, TB)
    Bp = G * TB

    x_flat = x.reshape(B).astype(jnp.float32)
    if Bp != B:
        x_flat = jnp.pad(x_flat, (0, Bp - B))     # pad rows computed, sliced off after
    x_slab = x_flat.reshape(G, NSUB, L)           # batch on (sublane, lane) axes

    # Pack the four small per-feature params into one (64, 4) tile:
    # one DMA stream + one VMEM tile instead of four lane-padded (64,1) streams.
    packed = jnp.concatenate(
        [w1.reshape(64, 1), b1.reshape(64, 1),
         b2.reshape(64, 1), w3.reshape(64, 1)], axis=1).astype(jnp.float32)
    w2f = w2.astype(jnp.float32)
    b3f = b3.reshape(1).astype(jnp.float32)

    flops = 2 * Bp * (64 * 64 + 2 * 64)           # MXU middle layer + two VPU layers
    bytes_accessed = 4 * (2 * Bp + 64 * 64 + 4 * 64 + 1)

    out_slab = pl.pallas_call(
        _mlp_kernel,
        out_shape=jax.ShapeDtypeStruct((G, NSUB, L), jnp.float32),
        grid=(G,),
        in_specs=[
            pl.BlockSpec((1, NSUB, L), lambda i: (i, 0, 0)),      # x slab (pipelined)
            pl.BlockSpec((64, 4), lambda i: (0, 0)),              # packed w1|b1|b2|w3
            pl.BlockSpec((64, 64), lambda i: (0, 0)),             # w2 (VMEM-resident)
            pl.BlockSpec(memory_space=pltpu.MemorySpace.SMEM),    # b3 scalar
        ],
        out_specs=pl.BlockSpec((1, NSUB, L), lambda i: (i, 0, 0)),  # dense (8,L) store
        compiler_params=pltpu.CompilerParams(
            # TODO(synk): on v7x switch this axis to pltpu.CORE_PARALLEL (2 TCs)
            # once G >= 2; "parallel" is kept here for portability to v5e/v6e.
            dimension_semantics=("parallel",)),
        cost_estimate=pl.CostEstimate(flops=flops, transcendentals=0,
                                      bytes_accessed=bytes_accessed),
    )(x_slab, packed, w2f, b3f)

    return out_slab.reshape(Bp, 1)[:B]


def init_params(key):
    """Deterministic init mimicking PyTorch Linear default (U[-1/sqrt(fan_in), +])."""
    ks = jax.random.split(key, 6)

    def linear(kw, kb, fan_in, fan_out):
        bound = 1.0 / jnp.sqrt(jnp.float32(fan_in))
        w = jax.random.uniform(kw, (fan_out, fan_in), jnp.float32, -bound, bound)
        b = jax.random.uniform(kb, (fan_out,), jnp.float32, -bound, bound)
        return w, b

    w1, b1 = linear(ks[0], ks[1], 1, 64)     # (64, 1), (64,)
    w2, b2 = linear(ks[2], ks[3], 64, 64)    # (64, 64), (64,)
    w3, b3 = linear(ks[4], ks[5], 64, 1)     # (1, 64), (1,)
    return w1, b1, w2, b2, w3, b3


def reference_forward(x, w1, b1, w2, b2, w3, b3):
    h1 = jnp.maximum(x @ w1.T + b1[None, :], 0.0)
    h2 = jnp.maximum(h1 @ w2.T + b2[None, :], 0.0)
    return h2 @ w3.T + b3[None, :]


if __name__ == "__main__":
    key = jax.random.PRNGKey(0)
    k_x, k_p = jax.random.split(key)
    params = init_params(k_p)

    # Small batch (as in the module's intended use) -- launch-overhead bound.
    batch = 8
    x = jax.random.uniform(k_x, (batch, 1), jnp.float32,
                           -2.0 * jnp.pi, 2.0 * jnp.pi)
    y = jax.block_until_ready(regression_model_forward(x, *params))
    y_ref = reference_forward(x, *params)
    assert y.shape == (batch, 1)
    assert jnp.allclose(y, y_ref, atol=1e-5, rtol=1e-5)

    # Non-multiple batch with multiple grid steps (exercises tiling + padding).
    batch2 = 2500
    x2 = jax.random.uniform(k_x, (batch2, 1), jnp.float32,
                            -2.0 * jnp.pi, 2.0 * jnp.pi)
    y2 = jax.block_until_ready(regression_model_forward(x2, *params, tb=1024))
    y2_ref = reference_forward(x2, *params)
    assert y2.shape == (batch2, 1)
    assert jnp.allclose(y2, y2_ref, atol=1e-5, rtol=1e-5)

    print("KERNEL_OK")
</pallas_src>

<mosaic_0001>
module attributes {stable_mosaic.version = 11 : i64} {
  func.func @_mlp_kernel(%arg0: i32, %arg1: memref<1x8x128xf32, #tpu.memory_space<vmem>>, %arg2: memref<64x4xf32, #tpu.memory_space<vmem>>, %arg3: memref<64x64xf32, #tpu.memory_space<vmem>>, %arg4: memref<1xf32, #tpu.memory_space<smem>>, %arg5: memref<1x8x128xf32, #tpu.memory_space<vmem>>) attributes {dimension_semantics = [#tpu.dimension_semantics<parallel>], iteration_bounds = array<i64: 1>, scalar_prefetch = 0 : i64, scratch_operands = 0 : i64, tpu.core_type = #tpu.core_type<tc>, window_params = [{transform_indices = @transform_0, window_bounds = array<i64: 1, 8, 128>}, {pipeline_mode = #tpu.pipeline_mode<synchronous>, transform_indices = @transform_1, window_bounds = array<i64: 64, 4>}, {pipeline_mode = #tpu.pipeline_mode<synchronous>, transform_indices = @transform_2, window_bounds = array<i64: 64, 64>}, {transform_indices = @transform_3, window_bounds = array<i64: 1>}, {transform_indices = @transform_4, window_bounds = array<i64: 1, 8, 128>}]} {
    %c0 = arith.constant 0 : index
    %c0_0 = arith.constant 0 : index
    %0 = vector.load %arg2[%c0, %c0_0] : memref<64x4xf32, #tpu.memory_space<vmem>>, vector<64x4xf32>
    %1 = vector.extract_strided_slice %0 {offsets = [0, 0], sizes = [64, 1], strides = [1, 1]} : vector<64x4xf32> to vector<64x1xf32>
    %2 = vector.shape_cast %1 : vector<64x1xf32> to vector<64x1xf32>
    %3 = vector.broadcast %2 : vector<64x1xf32> to vector<64x128xf32>
    %4 = vector.extract_strided_slice %0 {offsets = [0, 1], sizes = [64, 1], strides = [1, 1]} : vector<64x4xf32> to vector<64x1xf32>
    %5 = vector.shape_cast %4 : vector<64x1xf32> to vector<64x1xf32>
    %6 = vector.broadcast %5 : vector<64x1xf32> to vector<64x128xf32>
    %7 = vector.extract_strided_slice %0 {offsets = [0, 2], sizes = [64, 1], strides = [1, 1]} : vector<64x4xf32> to vector<64x1xf32>
    %8 = vector.shape_cast %7 : vector<64x1xf32> to vector<64x1xf32>
    %9 = vector.broadcast %8 : vector<64x1xf32> to vector<64x128xf32>
    %10 = vector.extract_strided_slice %0 {offsets = [0, 3], sizes = [64, 1], strides = [1, 1]} : vector<64x4xf32> to vector<64x1xf32>
    %11 = vector.shape_cast %10 : vector<64x1xf32> to vector<64x1xf32>
    %12 = vector.broadcast %11 : vector<64x1xf32> to vector<64x128xf32>
    %c0_1 = arith.constant 0 : index
    %c0_2 = arith.constant 0 : index
    %13 = vector.load %arg3[%c0_1, %c0_2] : memref<64x64xf32, #tpu.memory_space<vmem>>, vector<64x64xf32>
    %c0_3 = arith.constant 0 : index
    %14 = memref.load %arg4[%c0_3] : memref<1xf32, #tpu.memory_space<smem>>
    %c0_4 = arith.constant 0 : index
    %c0_5 = arith.constant 0 : index
    %c0_6 = arith.constant 0 : index
    %15 = vector.load %arg1[%c0_4, %c0_5, %c0_6] : memref<1x8x128xf32, #tpu.memory_space<vmem>>, vector<1x8x128xf32>
    %16 = vector.shape_cast %15 : vector<1x8x128xf32> to vector<8x128xf32>
    %17 = vector.extract_strided_slice %16 {offsets = [0, 0], sizes = [1, 128], strides = [1, 1]} : vector<8x128xf32> to vector<1x128xf32>
    %18 = vector.broadcast %17 : vector<1x128xf32> to vector<64x128xf32>
    %19 = arith.mulf %3, %18 : vector<64x128xf32>
    %20 = arith.addf %19, %6 : vector<64x128xf32>
    %cst = arith.constant 0.000000e+00 : f32
    %21 = vector.broadcast %cst : f32 to vector<64x128xf32>
    %22 = arith.maximumf %20, %21 : vector<64x128xf32>
    %cst_7 = arith.constant dense<0.000000e+00> : vector<64x128xf32>
    %23 = tpu.matmul %13, %22, %cst_7 {dimension_numbers = #tpu.dot_dimension_numbers<[1], [0], [0], [1], [0, 0, 1, 1], [], []>} : vector<64x64xf32>, vector<64x128xf32>, vector<64x128xf32> -> vector<64x128xf32>
    %24 = arith.addf %23, %9 : vector<64x128xf32>
    %cst_8 = arith.constant 0.000000e+00 : f32
    %25 = vector.broadcast %cst_8 : f32 to vector<64x128xf32>
    %26 = arith.maximumf %24, %25 : vector<64x128xf32>
    %27 = arith.mulf %26, %12 : vector<64x128xf32>
    %cst_9 = arith.constant dense<0.000000e+00> : vector<128xf32>
    %28 = vector.multi_reduction <add>, %27, %cst_9 [0] : vector<64x128xf32> to vector<128xf32>
    %29 = vector.shape_cast %28 : vector<128xf32> to vector<1x128xf32>
    %30 = vector.broadcast %14 : f32 to vector<1x128xf32>
    %31 = arith.addf %29, %30 : vector<1x128xf32>
    %32 = vector.extract_strided_slice %16 {offsets = [1, 0], sizes = [1, 128], strides = [1, 1]} : vector<8x128xf32> to vector<1x128xf32>
    %33 = vector.broadcast %32 : vector<1x128xf32> to vector<64x128xf32>
    %34 = arith.mulf %3, %33 : vector<64x128xf32>
    %35 = arith.addf %34, %6 : vector<64x128xf32>
    %cst_10 = arith.constant 0.000000e+00 : f32
    %36 = vector.broadcast %cst_10 : f32 to vector<64x128xf32>
    %37 = arith.maximumf %35, %36 : vector<64x128xf32>
    %cst_11 = arith.constant dense<0.000000e+00> : vector<64x128xf32>
    %38 = tpu.matmul %13, %37, %cst_11 {dimension_numbers = #tpu.dot_dimension_numbers<[1], [0], [0], [1], [0, 0, 1, 1], [], []>} : vector<64x64xf32>, vector<64x128xf32>, vector<64x128xf32> -> vector<64x128xf32>
    %39 = arith.addf %38, %9 : vector<64x128xf32>
    %cst_12 = arith.constant 0.000000e+00 : f32
    %40 = vector.broadcast %cst_12 : f32 to vector<64x128xf32>
    %41 = arith.maximumf %39, %40 : vector<64x128xf32>
    %42 = arith.mulf %41, %12 : vector<64x128xf32>
    %cst_13 = arith.constant dense<0.000000e+00> : vector<128xf32>
    %43 = vector.multi_reduction <add>, %42, %cst_13 [0] : vector<64x128xf32> to vector<128xf32>
    %44 = vector.shape_cast %43 : vector<128xf32> to vector<1x128xf32>
    %45 = vector.broadcast %14 : f32 to vector<1x128xf32>
    %46 = arith.addf %44, %45 : vector<1x128xf32>
    %47 = vector.extract_strided_slice %16 {offsets = [2, 0], sizes = [1, 128], strides = [1, 1]} : vector<8x128xf32> to vector<1x128xf32>
    %48 = vector.broadcast %47 : vector<1x128xf32> to vector<64x128xf32>
    %49 = arith.mulf %3, %48 : vector<64x128xf32>
    %50 = arith.addf %49, %6 : vector<64x128xf32>
    %cst_14 = arith.constant 0.000000e+00 : f32
    %51 = vector.broadcast %cst_14 : f32 to vector<64x128xf32>
    %52 = arith.maximumf %50, %51 : vector<64x128xf32>
    %cst_15 = arith.constant dense<0.000000e+00> : vector<64x128xf32>
    %53 = tpu.matmul %13, %52, %cst_15 {dimension_numbers = #tpu.dot_dimension_numbers<[1], [0], [0], [1], [0, 0, 1, 1], [], []>} : vector<64x64xf32>, vector<64x128xf32>, vector<64x128xf32> -> vector<64x128xf32>
    %54 = arith.addf %53, %9 : vector<64x128xf32>
    %cst_16 = arith.constant 0.000000e+00 : f32
    %55 = vector.broadcast %cst_16 : f32 to vector<64x128xf32>
    %56 = arith.maximumf %54, %55 : vector<64x128xf32>
    %57 = arith.mulf %56, %12 : vector<64x128xf32>
    %cst_17 = arith.constant dense<0.000000e+00> : vector<128xf32>
    %58 = vector.multi_reduction <add>, %57, %cst_17 [0] : vector<64x128xf32> to vector<128xf32>
    %59 = vector.shape_cast %58 : vector<128xf32> to vector<1x128xf32>
    %60 = vector.broadcast %14 : f32 to vector<1x128xf32>
    %61 = arith.addf %59, %60 : vector<1x128xf32>
    %62 = vector.extract_strided_slice %16 {offsets = [3, 0], sizes = [1, 128], strides = [1, 1]} : vector<8x128xf32> to vector<1x128xf32>
    %63 = vector.broadcast %62 : vector<1x128xf32> to vector<64x128xf32>
    %64 = arith.mulf %3, %63 : vector<64x128xf32>
    %65 = arith.addf %64, %6 : vector<64x128xf32>
    %cst_18 = arith.constant 0.000000e+00 : f32
    %66 = vector.broadcast %cst_18 : f32 to vector<64x128xf32>
    %67 = arith.maximumf %65, %66 : vector<64x128xf32>
    %cst_19 = arith.constant dense<0.000000e+00> : vector<64x128xf32>
    %68 = tpu.matmul %13, %67, %cst_19 {dimension_numbers = #tpu.dot_dimension_numbers<[1], [0], [0], [1], [0, 0, 1, 1], [], []>} : vector<64x64xf32>, vector<64x128xf32>, vector<64x128xf32> -> vector<64x128xf32>
    %69 = arith.addf %68, %9 : vector<64x128xf32>
    %cst_20 = arith.constant 0.000000e+00 : f32
    %70 = vector.broadcast %cst_20 : f32 to vector<64x128xf32>
    %71 = arith.maximumf %69, %70 : vector<64x128xf32>
    %72 = arith.mulf %71, %12 : vector<64x128xf32>
    %cst_21 = arith.constant dense<0.000000e+00> : vector<128xf32>
    %73 = vector.multi_reduction <add>, %72, %cst_21 [0] : vector<64x128xf32> to vector<128xf32>
    %74 = vector.shape_cast %73 : vector<128xf32> to vector<1x128xf32>
    %75 = vector.broadcast %14 : f32 to vector<1x128xf32>
    %76 = arith.addf %74, %75 : vector<1x128xf32>
    %77 = vector.extract_strided_slice %16 {offsets = [4, 0], sizes = [1, 128], strides = [1, 1]} : vector<8x128xf32> to vector<1x128xf32>
    %78 = vector.broadcast %77 : vector<1x128xf32> to vector<64x128xf32>
    %79 = arith.mulf %3, %78 : vector<64x128xf32>
    %80 = arith.addf %79, %6 : vector<64x128xf32>
    %cst_22 = arith.constant 0.000000e+00 : f32
    %81 = vector.broadcast %cst_22 : f32 to vector<64x128xf32>
    %82 = arith.maximumf %80, %81 : vector<64x128xf32>
    %cst_23 = arith.constant dense<0.000000e+00> : vector<64x128xf32>
    %83 = tpu.matmul %13, %82, %cst_23 {dimension_numbers = #tpu.dot_dimension_numbers<[1], [0], [0], [1], [0, 0, 1, 1], [], []>} : vector<64x64xf32>, vector<64x128xf32>, vector<64x128xf32> -> vector<64x128xf32>
    %84 = arith.addf %83, %9 : vector<64x128xf32>
    %cst_24 = arith.constant 0.000000e+00 : f32
    %85 = vector.broadcast %cst_24 : f32 to vector<64x128xf32>
    %86 = arith.maximumf %84, %85 : vector<64x128xf32>
    %87 = arith.mulf %86, %12 : vector<64x128xf32>
    %cst_25 = arith.constant dense<0.000000e+00> : vector<128xf32>
    %88 = vector.multi_reduction <add>, %87, %cst_25 [0] : vector<64x128xf32> to vector<128xf32>
    %89 = vector.shape_cast %88 : vector<128xf32> to vector<1x128xf32>
    %90 = vector.broadcast %14 : f32 to vector<1x128xf32>
    %91 = arith.addf %89, %90 : vector<1x128xf32>
    %92 = vector.extract_strided_slice %16 {offsets = [5, 0], sizes = [1, 128], strides = [1, 1]} : vector<8x128xf32> to vector<1x128xf32>
    %93 = vector.broadcast %92 : vector<1x128xf32> to vector<64x128xf32>
    %94 = arith.mulf %3, %93 : vector<64x128xf32>
    %95 = arith.addf %94, %6 : vector<64x128xf32>
    %cst_26 = arith.constant 0.000000e+00 : f32
    %96 = vector.broadcast %cst_26 : f32 to vector<64x128xf32>
    %97 = arith.maximumf %95, %96 : vector<64x128xf32>
    %cst_27 = arith.constant dense<0.000000e+00> : vector<64x128xf32>
    %98 = tpu.matmul %13, %97, %cst_27 {dimension_numbers = #tpu.dot_dimension_numbers<[1], [0], [0], [1], [0, 0, 1, 1], [], []>} : vector<64x64xf32>, vector<64x128xf32>, vector<64x128xf32> -> vector<64x128xf32>
    %99 = arith.addf %98, %9 : vector<64x128xf32>
    %cst_28 = arith.constant 0.000000e+00 : f32
    %100 = vector.broadcast %cst_28 : f32 to vector<64x128xf32>
    %101 = arith.maximumf %99, %100 : vector<64x128xf32>
    %102 = arith.mulf %101, %12 : vector<64x128xf32>
    %cst_29 = arith.constant dense<0.000000e+00> : vector<128xf32>
    %103 = vector.multi_reduction <add>, %102, %cst_29 [0] : vector<64x128xf32> to vector<128xf32>
    %104 = vector.shape_cast %103 : vector<128xf32> to vector<1x128xf32>
    %105 = vector.broadcast %14 : f32 to vector<1x128xf32>
    %106 = arith.addf %104, %105 : vector<1x128xf32>
    %107 = vector.extract_strided_slice %16 {offsets = [6, 0], sizes = [1, 128], strides = [1, 1]} : vector<8x128xf32> to vector<1x128xf32>
    %108 = vector.broadcast %107 : vector<1x128xf32> to vector<64x128xf32>
    %109 = arith.mulf %3, %108 : vector<64x128xf32>
    %110 = arith.addf %109, %6 : vector<64x128xf32>
    %cst_30 = arith.constant 0.000000e+00 : f32
    %111 = vector.broadcast %cst_30 : f32 to vector<64x128xf32>
    %112 = arith.maximumf %110, %111 : vector<64x128xf32>
    %cst_31 = arith.constant dense<0.000000e+00> : vector<64x128xf32>
    %113 = tpu.matmul %13, %112, %cst_31 {dimension_numbers = #tpu.dot_dimension_numbers<[1], [0], [0], [1], [0, 0, 1, 1], [], []>} : vector<64x64xf32>, vector<64x128xf32>, vector<64x128xf32> -> vector<64x128xf32>
    %114 = arith.addf %113, %9 : vector<64x128xf32>
    %cst_32 = arith.constant 0.000000e+00 : f32
    %115 = vector.broadcast %cst_32 : f32 to vector<64x128xf32>
    %116 = arith.maximumf %114, %115 : vector<64x128xf32>
    %117 = arith.mulf %116, %12 : vector<64x128xf32>
    %cst_33 = arith.constant dense<0.000000e+00> : vector<128xf32>
    %118 = vector.multi_reduction <add>, %117, %cst_33 [0] : vector<64x128xf32> to vector<128xf32>
    %119 = vector.shape_cast %118 : vector<128xf32> to vector<1x128xf32>
    %120 = vector.broadcast %14 : f32 to vector<1x128xf32>
    %121 = arith.addf %119, %120 : vector<1x128xf32>
    %122 = vector.extract_strided_slice %16 {offsets = [7, 0], sizes = [1, 128], strides = [1, 1]} : vector<8x128xf32> to vector<1x128xf32>
    %123 = vector.broadcast %122 : vector<1x128xf32> to vector<64x128xf32>
    %124 = arith.mulf %3, %123 : vector<64x128xf32>
    %125 = arith.addf %124, %6 : vector<64x128xf32>
    %cst_34 = arith.constant 0.000000e+00 : f32
    %126 = vector.broadcast %cst_34 : f32 to vector<64x128xf32>
    %127 = arith.maximumf %125, %126 : vector<64x128xf32>
    %cst_35 = arith.constant dense<0.000000e+00> : vector<64x128xf32>
    %128 = tpu.matmul %13, %127, %cst_35 {dimension_numbers = #tpu.dot_dimension_numbers<[1], [0], [0], [1], [0, 0, 1, 1], [], []>} : vector<64x64xf32>, vector<64x128xf32>, vector<64x128xf32> -> vector<64x128xf32>
    %129 = arith.addf %128, %9 : vector<64x128xf32>
    %cst_36 = arith.constant 0.000000e+00 : f32
    %130 = vector.broadcast %cst_36 : f32 to vector<64x128xf32>
    %131 = arith.maximumf %129, %130 : vector<64x128xf32>
    %132 = arith.mulf %131, %12 : vector<64x128xf32>
    %cst_37 = arith.constant dense<0.000000e+00> : vector<128xf32>
    %133 = vector.multi_reduction <add>, %132, %cst_37 [0] : vector<64x128xf32> to vector<128xf32>
    %134 = vector.shape_cast %133 : vector<128xf32> to vector<1x128xf32>
    %135 = vector.broadcast %14 : f32 to vector<1x128xf32>
    %136 = arith.addf %134, %135 : vector<1x128xf32>
    %137 = tpu.concatenate %31, %46, %61, %76, %91, %106, %121, %136 in 0 : vector<1x128xf32>, vector<1x128xf32>, vector<1x128xf32>, vector<1x128xf32>, vector<1x128xf32>, vector<1x128xf32>, vector<1x128xf32>, vector<1x128xf32> -> vector<8x128xf32>
    %c0_38 = arith.constant 0 : index
    %c0_39 = arith.constant 0 : index
    %c0_40 = arith.constant 0 : index
    %138 = vector.load %arg5[%c0_38, %c0_39, %c0_40] : memref<1x8x128xf32, #tpu.memory_space<vmem>>, vector<1x8x128xf32>
    %139 = vector.shape_cast %138 : vector<1x8x128xf32> to vector<8x128xf32>
    %140 = vector.shape_cast %137 : vector<8x128xf32> to vector<1x8x128xf32>
    tpu.vector_store %arg5[%c0_38, %c0_39, %c0_40], %140 {strides = array<i32>} : memref<1x8x128xf32, #tpu.memory_space<vmem>>, vector<1x8x128xf32>,
    return
  }
  func.func @transform_0(%arg0: i32) -> (i32, i32, i32) {
    %c0_i32 = arith.constant 0 : i32
    %c0_i32_0 = arith.constant 0 : i32
    %c0_i32_1 = arith.constant 0 : i32
    return %arg0, %c0_i32, %c0_i32_0 : i32, i32, i32
  }
  func.func @transform_1(%arg0: i32) -> (i32, i32) {
    %c0_i32 = arith.constant 0 : i32
    %c0_i32_0 = arith.constant 0 : i32
    %c0_i32_1 = arith.constant 0 : i32
    return %c0_i32, %c0_i32_0 : i32, i32
  }
  func.func @transform_2(%arg0: i32) -> (i32, i32) {
    %c0_i32 = arith.constant 0 : i32
    %c0_i32_0 = arith.constant 0 : i32
    %c0_i32_1 = arith.constant 0 : i32
    return %c0_i32, %c0_i32_0 : i32, i32
  }
  func.func @transform_3(%arg0: i32) -> i32 {
    %c0_i32 = arith.constant 0 : i32
    %c0_i32_0 = arith.constant 0 : i32
    return %c0_i32 : i32
  }
  func.func @transform_4(%arg0: i32) -> (i32, i32, i32) {
    %c0_i32 = arith.constant 0 : i32
    %c0_i32_0 = arith.constant 0 : i32
    %c0_i32_1 = arith.constant 0 : i32
    return %arg0, %c0_i32, %c0_i32_0 : i32, i32, i32
  }
}

</mosaic_0001>

<llo_original>
// kernel: tpu_custom_call.1
$region0: #{tpu_custom_call.1}
  #allocation0 [shape = 'u32[]', space=smem, size = 0x4, offset = 0x4, fixed_abs, tag = 'smem constant byte address 0x4 - core index']
  #allocation1 [shape = 'u32[144,128]{1,0:T(1,128)}', space=vmem, size = 0x12000, scoped, tag = 'internal scratch']
  #allocation2 [shape = 'f32[1]{0:T(128)S(6)}', space=smem, size = 0x200, scoped, tag = 'scoped memory for tpu_custom_call.1']
  %s0 = inlined_call_operand.vmem [shape: f32[1,8,128], index: 0, kind: input, shape index: {}]
  %s1 = inlined_call_operand.vmem [shape: f32[64,4], index: 1, kind: input, shape index: {}]
  %s2 = inlined_call_operand.vmem [shape: f32[64,64], index: 2, kind: input, shape index: {}]
  %s3 = inlined_call_operand.<no memory space> [shape: f32[1], index: 3, kind: input, shape index: {}]
  %s4 = inlined_call_operand.hbm [shape: f32[1,8,128], index: 4, kind: output, shape index: {}]
  %s5 = sld [smem:[#allocation0]]
  $region26: #{tpu_custom_call.1} parent=0
    _
  %s7 = ssub.s32 1, %s5
  %s8 = scalar_select 0, %s7, %s5
  %9 = sst [smem:[#allocation2]] %s3
  $region1: #{tpu_custom_call.1} parent=0
    #allocation3 [shape = 'u8[4096]{0}', space=vmem, size = 0x1000, scoped, tag = 'output window, operand 0, single buffered']
    #allocation4 [shape = 's32[1]{0}', space=sflag, size = 0x4, scoped, tag = 'scoped memory for tpu_custom_call.1']
    %10 = vsyncpa [#allocation4], 0
    // Predicated region
    $region2: #{tpu_custom_call.1} parent=1 // pred_check
      _
    $region3: #{tpu_custom_call.1} parent=1 // pred_check_branch
      %12 = sbr.rel (0) target = $region5
    $region4: #{tpu_custom_call.1} parent=1 // pred_region
      _
    $region5: #{tpu_custom_call.1} parent=1 // pred_fallthru
      _
    // Predicated region
    $region6: #{tpu_custom_call.1} parent=1 // pred_check
      _
    $region7: #{tpu_custom_call.1} parent=1 // pred_check_branch
      %14 = sbr.rel (0) target = $region9
    $region8: #{tpu_custom_call.1} parent=1 // pred_region
      _
    $region9: #{tpu_custom_call.1} parent=1 // pred_fallthru
      _
    // Predicated region
    $region10: #{tpu_custom_call.1} parent=1 // pred_check
      _
    $region11: #{tpu_custom_call.1} parent=1 // pred_check_branch
      %16 = sbr.rel (0) target = $region13
    $region12: #{tpu_custom_call.1} parent=1 // pred_region
      _
    $region13: #{tpu_custom_call.1} parent=1 // pred_fallthru
      _
    // Predicated region
    $region14: #{tpu_custom_call.1} parent=1 // pred_check
      _
    $region15: #{tpu_custom_call.1} parent=1 // pred_check_branch
      %18 = sbr.rel (0) target = $region17
    $region16: #{tpu_custom_call.1} parent=1 // pred_region
      _
    $region17: #{tpu_custom_call.1} parent=1 // pred_fallthru
      _
    %v19 = vld [vmem:[%s1] sm:$0xff]
    %v20 = vld [vmem:[%s1 + $0x8] sm:$0xff]
    %v21 = vld [vmem:[%s1 + $0x10] sm:$0xff]
    %v22 = vld [vmem:[%s1 + $0x18] sm:$0xff]
    %v23 = vld [vmem:[%s1 + $0x20] sm:$0xff]
    %v24 = vld [vmem:[%s1 + $0x28] sm:$0xff]
    %v25 = vld [vmem:[%s1 + $0x30] sm:$0xff]
    %v26 = vld [vmem:[%s1 + $0x38] sm:$0xff]
    %28 = vset.pattern.permute.xlu0 0
    %29 = vperm.xlu0 %28, %v19
    %v30 = vpop.permute.xlu0 %29
    %33 = vset.pattern.permute.xlu0 0
    %34 = vperm.xlu0 %33, %v20
    %v35 = vpop.permute.xlu0 %34
    %38 = vset.pattern.permute.xlu0 0
    %39 = vperm.xlu0 %38, %v21
    %v40 = vpop.permute.xlu0 %39
    %43 = vset.pattern.permute.xlu0 0
    %44 = vperm.xlu0 %43, %v22
    %v45 = vpop.permute.xlu0 %44
    %48 = vset.pattern.permute.xlu0 0
    %49 = vperm.xlu0 %48, %v23
    %v50 = vpop.permute.xlu0 %49
    %53 = vset.pattern.permute.xlu0 0
    %54 = vperm.xlu0 %53, %v24
    %v55 = vpop.permute.xlu0 %54
    %58 = vset.pattern.permute.xlu0 0
    %59 = vperm.xlu0 %58, %v25
    %v60 = vpop.permute.xlu0 %59
    %63 = vset.pattern.permute.xlu0 0
    %64 = vperm.xlu0 %63, %v26
    %v65 = vpop.permute.xlu0 %64
    %67 = vset.pattern.permute.xlu0 1
    %68 = vperm.xlu0 %67, %v19
    %v69 = vpop.permute.xlu0 %68
    %71 = vset.pattern.permute.xlu0 1
    %72 = vperm.xlu0 %71, %v20
    %v73 = vpop.permute.xlu0 %72
    %75 = vset.pattern.permute.xlu0 1
    %76 = vperm.xlu0 %75, %v21
    %v77 = vpop.permute.xlu0 %76
    %79 = vset.pattern.permute.xlu0 1
    %80 = vperm.xlu0 %79, %v22
    %v81 = vpop.permute.xlu0 %80
    %83 = vset.pattern.permute.xlu0 1
    %84 = vperm.xlu0 %83, %v23
    %v85 = vpop.permute.xlu0 %84
    %87 = vset.pattern.permute.xlu0 1
    %88 = vperm.xlu0 %87, %v24
    %v89 = vpop.permute.xlu0 %88
    %91 = vset.pattern.permute.xlu0 1
    %92 = vperm.xlu0 %91, %v25
    %v93 = vpop.permute.xlu0 %92
    %95 = vset.pattern.permute.xlu0 1
    %96 = vperm.xlu0 %95, %v26
    %v97 = vpop.permute.xlu0 %96
    %99 = vset.pattern.permute.xlu0 2
    %100 = vperm.xlu0 %99, %v19
    %v101 = vpop.permute.xlu0 %100
    %103 = vset.pattern.permute.xlu0 2
    %104 = vperm.xlu0 %103, %v20
    %v105 = vpop.permute.xlu0 %104
    %107 = vset.pattern.permute.xlu0 2
    %108 = vperm.xlu0 %107, %v21
    %v109 = vpop.permute.xlu0 %108
    %111 = vset.pattern.permute.xlu0 2
    %112 = vperm.xlu0 %111, %v22
    %v113 = vpop.permute.xlu0 %112
    %115 = vset.pattern.permute.xlu0 2
    %116 = vperm.xlu0 %115, %v23
    %v117 = vpop.permute.xlu0 %116
    %119 = vset.pattern.permute.xlu0 2
    %120 = vperm.xlu0 %119, %v24
    %v121 = vpop.permute.xlu0 %120
    %123 = vset.pattern.permute.xlu0 2
    %124 = vperm.xlu0 %123, %v25
    %v125 = vpop.permute.xlu0 %124
    %127 = vset.pattern.permute.xlu0 2
    %128 = vperm.xlu0 %127, %v26
    %v129 = vpop.permute.xlu0 %128
    %131 = vset.pattern.permute.xlu0 3
    %132 = vperm.xlu0 %131, %v19
    %v133 = vpop.permute.xlu0 %132
    %135 = vset.pattern.permute.xlu0 3
    %136 = vperm.xlu0 %135, %v20
    %v137 = vpop.permute.xlu0 %136
    %139 = vset.pattern.permute.xlu0 3
    %140 = vperm.xlu0 %139, %v21
    %v141 = vpop.permute.xlu0 %140
    %143 = vset.pattern.permute.xlu0 3
    %144 = vperm.xlu0 %143, %v22
    %v145 = vpop.permute.xlu0 %144
    %147 = vset.pattern.permute.xlu0 3
    %148 = vperm.xlu0 %147, %v23
    %v149 = vpop.permute.xlu0 %148
    %151 = vset.pattern.permute.xlu0 3
    %152 = vperm.xlu0 %151, %v24
    %v153 = vpop.permute.xlu0 %152
    %155 = vset.pattern.permute.xlu0 3
    %156 = vperm.xlu0 %155, %v25
    %v157 = vpop.permute.xlu0 %156
    %159 = vset.pattern.permute.xlu0 3
    %160 = vperm.xlu0 %159, %v26
    %v161 = vpop.permute.xlu0 %160
    %v163 = vld [vmem:[%s2] sm:$0xff]
    %v164 = vld [vmem:[%s2 + $0x8] sm:$0xff]
    %v165 = vld [vmem:[%s2 + $0x10] sm:$0xff]
    %v166 = vld [vmem:[%s2 + $0x18] sm:$0xff]
    %v167 = vld [vmem:[%s2 + $0x20] sm:$0xff]
    %v168 = vld [vmem:[%s2 + $0x28] sm:$0xff]
    %v169 = vld [vmem:[%s2 + $0x30] sm:$0xff]
    %v170 = vld [vmem:[%s2 + $0x38] sm:$0xff]
    %s171 = sld [smem:[#allocation2]]
    %v172 = vld [vmem:[%s0] sm:$0xff]
    %v173 = vlaneseq
    %v174 = vshrl.u32 %v173, 7
    %v175 = vsub.s32 0, %v174
    %v176 = vrot.slane %v172, %v175
    %v177 = vmul.f32 %v30, %v176
    %v178 = vmul.f32 %v35, %v176
    %v179 = vmul.f32 %v40, %v176
    %v180 = vmul.f32 %v45, %v176
    %v181 = vmul.f32 %v50, %v176
    %v182 = vmul.f32 %v55, %v176
    %v183 = vmul.f32 %v60, %v176
    %v184 = vmul.f32 %v65, %v176
    %v185 = vadd.f32 %v177, %v69
    %v186 = vadd.f32 %v178, %v73
    %v187 = vadd.f32 %v179, %v77
    %v188 = vadd.f32 %v180, %v81
    %v189 = vadd.f32 %v181, %v85
    %v190 = vadd.f32 %v182, %v89
    %v191 = vadd.f32 %v183, %v93
    %v192 = vadd.f32 %v184, %v97
    %v193 = vmax.f32 %v185, 0.0
    %v194 = vmax.f32 %v186, 0.0
    %v195 = vmax.f32 %v187, 0.0
    %v196 = vmax.f32 %v188, 0.0
    %v197 = vmax.f32 %v189, 0.0
    %v198 = vmax.f32 %v190, 0.0
    %v199 = vmax.f32 %v191, 0.0
    %v200 = vmax.f32 %v192, 0.0
    %vm201 = vcmask 523264
    %v203 = vsel %vm201, %v163, 0
    %v206 = vsel %vm201, %v164, 0
    %v209 = vsel %vm201, %v165, 0
    %v212 = vsel %vm201, %v166, 0
    %v215 = vsel %vm201, %v167, 0
    %v218 = vsel %vm201, %v168, 0
    %v221 = vsel %vm201, %v169, 0
    %v224 = vsel %vm201, %v170, 0
    %226 = vmatprep.subr.mxu0 0.0
    %227 = vmatpush1.msra.mxu0 0.0
    %228 = vmatprep.subr.mxu0 0.0
    %229 = vmatpush1.msra.mxu0 0.0
    %230 = vmatprep.subr.mxu0 0.0
    %231 = vmatpush1.msra.mxu0 0.0
    %232 = vmatprep.subr.mxu0 0.0
    %233 = vmatpush1.msra.mxu0 0.0
    %234 = vmatprep.subr.mxu0 0.0
    %235 = vmatpush1.msra.mxu0 0.0
    %236 = vmatprep.subr.mxu0 0.0
    %237 = vmatpush1.msra.mxu0 0.0
    %238 = vmatprep.subr.mxu0 0.0
    %239 = vmatpush1.msra.mxu0 0.0
    %240 = vmatprep.subr.mxu0 0.0
    %241 = vmatpush1.msra.mxu0 0.0
    %242 = vmatprep.subr.mxu0 0.0
    %243 = vmatpush1.msra.mxu0 %v200
    %244 = vmatprep.subr.mxu0 0.0
    %245 = vmatpush1.msra.mxu0 %v199
    %246 = vmatprep.subr.mxu0 0.0
    %247 = vmatpush1.msra.mxu0 %v198
    %248 = vmatprep.subr.mxu0 0.0
    %249 = vmatpush1.msra.mxu0 %v197
    %250 = vmatprep.subr.mxu0 0.0
    %251 = vmatpush1.msra.mxu0 %v196
    %252 = vmatprep.subr.mxu0 0.0
    %253 = vmatpush1.msra.mxu0 %v195
    %254 = vmatprep.subr.mxu0 0.0
    %255 = vmatpush1.msra.mxu0 %v194
    %256 = vmatprep.subr.mxu0 0.0
    %257 = vmatpush1.msra.mxu0 %v193
    %258 = vmatprep.subr.mxu0 0.0
    %259 = vmatpush2.msra.mxu0 0.0
    %260 = vmatprep.subr.mxu0 0.0
    %261 = vmatpush2.msra.mxu0 0.0
    %262 = vmatprep.subr.mxu0 0.0
    %263 = vmatpush2.msra.mxu0 0.0
    %264 = vmatprep.subr.mxu0 0.0
    %265 = vmatpush2.msra.mxu0 0.0
    %266 = vmatprep.subr.mxu0 0.0
    %267 = vmatpush2.msra.mxu0 0.0
    %268 = vmatprep.subr.mxu0 0.0
    %269 = vmatpush2.msra.mxu0 0.0
    %270 = vmatprep.subr.mxu0 0.0
    %271 = vmatpush2.msra.mxu0 0.0
    %272 = vmatprep.subr.mxu0 0.0
    %273 = vmatpush2.msra.mxu0 0.0
    %274 = vmatprep.subr.mxu0 0.0
    %275 = vmatpush2.msra.mxu0 0.0
    %276 = vmatprep.subr.mxu0 0.0
    %277 = vmatpush2.msra.mxu0 0.0
    %278 = vmatprep.subr.mxu0 0.0
    %279 = vmatpush2.msra.mxu0 0.0
    %280 = vmatprep.subr.mxu0 0.0
    %281 = vmatpush2.msra.mxu0 0.0
    %282 = vmatprep.subr.mxu0 0.0
    %283 = vmatpush2.msra.mxu0 0.0
    %284 = vmatprep.subr.mxu0 0.0
    %285 = vmatpush2.msra.mxu0 0.0
    %286 = vmatprep.subr.mxu0 0.0
    %287 = vmatpush2.msra.mxu0 0.0
    %288 = vmatprep.subr.mxu0 0.0
    %289 = vmatpush2.msra.mxu0 0.0
    %290 = vmatprep.mubr.f32.mxu0 0.0
    %291 = vmatmul.mubr.f32.gmra.mxu0 %v203
    %v292 = vpop.f32.mrf.mxu0
    %v293 = vadd.f32 %v101, %v292
    %v294 = vpop.f32.mrf.mxu0
    %295 = vmatprep.mubr.f32.mxu0 0.0
    %296 = vmatmul.mubr.f32.gmra.mxu0 %v206
    %v297 = vpop.f32.mrf.mxu0
    %v298 = vadd.f32 %v105, %v297
    %v299 = vpop.f32.mrf.mxu0
    %300 = vmatprep.mubr.f32.mxu0 0.0
    %301 = vmatmul.mubr.f32.gmra.mxu0 %v209
    %v302 = vpop.f32.mrf.mxu0
    %v303 = vadd.f32 %v109, %v302
    %v304 = vpop.f32.mrf.mxu0
    %305 = vmatprep.mubr.f32.mxu0 0.0
    %306 = vmatmul.mubr.f32.gmra.mxu0 %v212
    %v307 = vpop.f32.mrf.mxu0
    %v308 = vadd.f32 %v113, %v307
    %v309 = vpop.f32.mrf.mxu0
    %310 = vmatprep.mubr.f32.mxu0 0.0
    %311 = vmatmul.mubr.f32.gmra.mxu0 %v215
    %v312 = vpop.f32.mrf.mxu0
    %v313 = vadd.f32 %v117, %v312
    %v314 = vpop.f32.mrf.mxu0
    %315 = vmatprep.mubr.f32.mxu0 0.0
    %316 = vmatmul.mubr.f32.gmra.mxu0 %v218
    %v317 = vpop.f32.mrf.mxu0
    %v318 = vadd.f32 %v121, %v317
    %v319 = vpop.f32.mrf.mxu0
    %320 = vmatprep.mubr.f32.mxu0 0.0
    %321 = vmatmul.mubr.f32.gmra.mxu0 %v221
    %v322 = vpop.f32.mrf.mxu0
    %v323 = vadd.f32 %v125, %v322
    %v324 = vpop.f32.mrf.mxu0
    %325 = vmatprep.mubr.f32.mxu0 0.0
    %326 = vmatmul.mubr.f32.gmra.mxu0 %v224
    %v327 = vpop.f32.mrf.mxu0
    %v328 = vadd.f32 %v129, %v327
    %v329 = vpop.f32.mrf.mxu0
    %330 = vdwg.mxu0
    %v331 = vmax.f32 %v293, 0.0
    %v332 = vmax.f32 %v298, 0.0
    %v333 = vmax.f32 %v303, 0.0
    %v334 = vmax.f32 %v308, 0.0
    %v335 = vmax.f32 %v313, 0.0
    %v336 = vmax.f32 %v318, 0.0
    %v337 = vmax.f32 %v323, 0.0
    %v338 = vmax.f32 %v328, 0.0
    %v339 = vmul.f32 %v331, %v133
    %v340 = vmul.f32 %v332, %v137
    %v341 = vmul.f32 %v333, %v141
    %v342 = vmul.f32 %v334, %v145
    %v343 = vmul.f32 %v335, %v149
    %v344 = vmul.f32 %v336, %v153
    %v345 = vmul.f32 %v337, %v157
    %v346 = vmul.f32 %v338, %v161
    %v347 = vadd.f32 %v339, %v340
    %v348 = vadd.f32 %v347, %v341
    %v349 = vadd.f32 %v348, %v342
    %v350 = vadd.f32 %v349, %v343
    %v351 = vadd.f32 %v350, %v344
    %v352 = vadd.f32 %v351, %v345
    %v353 = vadd.f32 %v352, %v346
    %v354 = vrot.slane %v353, 4
    %v355 = vadd.f32 %v353, %v354
    %v356 = vrot.slane %v355, 2
    %v357 = vadd.f32 %v355, %v356
    %v358 = vrot.slane %v357, 1
    %v359 = vadd.f32 %v357, %v358
    %v360 = vstv %s171
    %v361 = vadd.f32 %v359, %v360
    %v362 = vlaneseq
    %v363 = vshrl.u32 %v362, 7
    %v364 = vsub.s32 1, %v363
    %v365 = vrot.slane %v172, %v364
    %v366 = vmul.f32 %v30, %v365
    %v367 = vmul.f32 %v35, %v365
    %v368 = vmul.f32 %v40, %v365
    %v369 = vmul.f32 %v45, %v365
    %v370 = vmul.f32 %v50, %v365
    %v371 = vmul.f32 %v55, %v365
    %v372 = vmul.f32 %v60, %v365
    %v373 = vmul.f32 %v65, %v365
    %v374 = vadd.f32 %v366, %v69
    %v375 = vadd.f32 %v367, %v73
    %v376 = vadd.f32 %v368, %v77
    %v377 = vadd.f32 %v369, %v81
    %v378 = vadd.f32 %v370, %v85
    %v379 = vadd.f32 %v371, %v89
    %v380 = vadd.f32 %v372, %v93
    %v381 = vadd.f32 %v373, %v97
    %v382 = vmax.f32 %v374, 0.0
    %v383 = vmax.f32 %v375, 0.0
    %v384 = vmax.f32 %v376, 0.0
    %v385 = vmax.f32 %v377, 0.0
    %v386 = vmax.f32 %v378, 0.0
    %v387 = vmax.f32 %v379, 0.0
    %v388 = vmax.f32 %v380, 0.0
    %v389 = vmax.f32 %v381, 0.0
    %390 = vmatprep.subr.mxu0 0.0
    %391 = vmatpush1.msra.mxu0 0.0
    %392 = vmatprep.subr.mxu0 0.0
    %393 = vmatpush1.msra.mxu0 0.0
    %394 = vmatprep.subr.mxu0 0.0
    %395 = vmatpush1.msra.mxu0 0.0
    %396 = vmatprep.subr.mxu0 0.0
    %397 = vmatpush1.msra.mxu0 0.0
    %398 = vmatprep.subr.mxu0 0.0
    %399 = vmatpush1.msra.mxu0 0.0
    %400 = vmatprep.subr.mxu0 0.0
    %401 = vmatpush1.msra.mxu0 0.0
    %402 = vmatprep.subr.mxu0 0.0
    %403 = vmatpush1.msra.mxu0 0.0
    %404 = vmatprep.subr.mxu0 0.0
    %405 = vmatpush1.msra.mxu0 0.0
    %406 = vmatprep.subr.mxu0 0.0
    %407 = vmatpush1.msra.mxu0 %v389
    %408 = vmatprep.subr.mxu0 0.0
    %409 = vmatpush1.msra.mxu0 %v388
    %410 = vmatprep.subr.mxu0 0.0
    %411 = vmatpush1.msra.mxu0 %v387
    %412 = vmatprep.subr.mxu0 0.0
    %413 = vmatpush1.msra.mxu0 %v386
    %414 = vmatprep.subr.mxu0 0.0
    %415 = vmatpush1.msra.mxu0 %v385
    %416 = vmatprep.subr.mxu0 0.0
    %417 = vmatpush1.msra.mxu0 %v384
    %418 = vmatprep.subr.mxu0 0.0
    %419 = vmatpush1.msra.mxu0 %v383
    %420 = vmatprep.subr.mxu0 0.0
    %421 = vmatpush1.msra.mxu0 %v382
    %422 = vmatprep.subr.mxu0 0.0
    %423 = vmatpush2.msra.mxu0 0.0
    %424 = vmatprep.subr.mxu0 0.0
    %425 = vmatpush2.msra.mxu0 0.0
    %426 = vmatprep.subr.mxu0 0.0
    %427 = vmatpush2.msra.mxu0 0.0
    %428 = vmatprep.subr.mxu0 0.0
    %429 = vmatpush2.msra.mxu0 0.0
    %430 = vmatprep.subr.mxu0 0.0
    %431 = vmatpush2.msra.mxu0 0.0
    %432 = vmatprep.subr.mxu0 0.0
    %433 = vmatpush2.msra.mxu0 0.0
    %434 = vmatprep.subr.mxu0 0.0
    %435 = vmatpush2.msra.mxu0 0.0
    %436 = vmatprep.subr.mxu0 0.0
    %437 = vmatpush2.msra.mxu0 0.0
    %438 = vmatprep.subr.mxu0 0.0
    %439 = vmatpush2.msra.mxu0 0.0
    %440 = vmatprep.subr.mxu0 0.0
    %441 = vmatpush2.msra.mxu0 0.0
    %442 = vmatprep.subr.mxu0 0.0
    %443 = vmatpush2.msra.mxu0 0.0
    %444 = vmatprep.subr.mxu0 0.0
    %445 = vmatpush2.msra.mxu0 0.0
    %446 = vmatprep.subr.mxu0 0.0
    %447 = vmatpush2.msra.mxu0 0.0
    %448 = vmatprep.subr.mxu0 0.0
    %449 = vmatpush2.msra.mxu0 0.0
    %450 = vmatprep.subr.mxu0 0.0
    %451 = vmatpush2.msra.mxu0 0.0
    %452 = vmatprep.subr.mxu0 0.0
    %453 = vmatpush2.msra.mxu0 0.0
    %454 = vmatprep.mubr.f32.mxu0 0.0
    %455 = vmatmul.mubr.f32.gmra.mxu0 %v203
    %v456 = vpop.f32.mrf.mxu0
    %v457 = vadd.f32 %v101, %v456
    %v458 = vpop.f32.mrf.mxu0
    %459 = vmatprep.mubr.f32.mxu0 0.0
    %460 = vmatmul.mubr.f32.gmra.mxu0 %v206
    %v461 = vpop.f32.mrf.mxu0
    %v462 = vadd.f32 %v105, %v461
    %v463 = vpop.f32.mrf.mxu0
    %464 = vmatprep.mubr.f32.mxu0 0.0
    %465 = vmatmul.mubr.f32.gmra.mxu0 %v209
    %v466 = vpop.f32.mrf.mxu0
    %v467 = vadd.f32 %v109, %v466
    %v468 = vpop.f32.mrf.mxu0
    %469 = vmatprep.mubr.f32.mxu0 0.0
    %470 = vmatmul.mubr.f32.gmra.mxu0 %v212
    %v471 = vpop.f32.mrf.mxu0
    %v472 = vadd.f32 %v113, %v471
    %v473 = vpop.f32.mrf.mxu0
    %474 = vmatprep.mubr.f32.mxu0 0.0
    %475 = vmatmul.mubr.f32.gmra.mxu0 %v215
    %v476 = vpop.f32.mrf.mxu0
    %v477 = vadd.f32 %v117, %v476
    %v478 = vpop.f32.mrf.mxu0
    %479 = vmatprep.mubr.f32.mxu0 0.0
    %480 = vmatmul.mubr.f32.gmra.mxu0 %v218
    %v481 = vpop.f32.mrf.mxu0
    %v482 = vadd.f32 %v121, %v481
    %v483 = vpop.f32.mrf.mxu0
    %484 = vmatprep.mubr.f32.mxu0 0.0
    %485 = vmatmul.mubr.f32.gmra.mxu0 %v221
    %v486 = vpop.f32.mrf.mxu0
    %v487 = vadd.f32 %v125, %v486
    %v488 = vpop.f32.mrf.mxu0
    %489 = vmatprep.mubr.f32.mxu0 0.0
    %490 = vmatmul.mubr.f32.gmra.mxu0 %v224
    %v491 = vpop.f32.mrf.mxu0
    %v492 = vadd.f32 %v129, %v491
    %v493 = vpop.f32.mrf.mxu0
    %494 = vdwg.mxu0
    %v495 = vmax.f32 %v457, 0.0
    %v496 = vmax.f32 %v462, 0.0
    %v497 = vmax.f32 %v467, 0.0
    %v498 = vmax.f32 %v472, 0.0
    %v499 = vmax.f32 %v477, 0.0
    %v500 = vmax.f32 %v482, 0.0
    %v501 = vmax.f32 %v487, 0.0
    %v502 = vmax.f32 %v492, 0.0
    %v503 = vmul.f32 %v495, %v133
    %v504 = vmul.f32 %v496, %v137
    %v505 = vmul.f32 %v497, %v141
    %v506 = vmul.f32 %v498, %v145
    %v507 = vmul.f32 %v499, %v149
    %v508 = vmul.f32 %v500, %v153
    %v509 = vmul.f32 %v501, %v157
    %v510 = vmul.f32 %v502, %v161
    %v511 = vadd.f32 %v503, %v504
    %v512 = vadd.f32 %v511, %v505
    %v513 = vadd.f32 %v512, %v506
    %v514 = vadd.f32 %v513, %v507
    %v515 = vadd.f32 %v514, %v508
    %v516 = vadd.f32 %v515, %v509
    %v517 = vadd.f32 %v516, %v510
    %v518 = vrot.slane %v517, 4
    %v519 = vadd.f32 %v517, %v518
    %v520 = vrot.slane %v519, 2
    %v521 = vadd.f32 %v519, %v520
    %v522 = vrot.slane %v521, 1
    %v523 = vadd.f32 %v521, %v522
    %v524 = vadd.f32 %v523, %v360
    %v525 = vlaneseq
    %v526 = vshrl.u32 %v525, 7
    %v527 = vsub.s32 2, %v526
    %v528 = vrot.slane %v172, %v527
    %v529 = vmul.f32 %v30, %v528
    %v530 = vmul.f32 %v35, %v528
    %v531 = vmul.f32 %v40, %v528
    %v532 = vmul.f32 %v45, %v528
    %v533 = vmul.f32 %v50, %v528
    %v534 = vmul.f32 %v55, %v528
    %v535 = vmul.f32 %v60, %v528
    %v536 = vmul.f32 %v65, %v528
    %v537 = vadd.f32 %v529, %v69
    %v538 = vadd.f32 %v530, %v73
    %v539 = vadd.f32 %v531, %v77
    %v540 = vadd.f32 %v532, %v81
    %v541 = vadd.f32 %v533, %v85
    %v542 = vadd.f32 %v534, %v89
    %v543 = vadd.f32 %v535, %v93
    %v544 = vadd.f32 %v536, %v97
    %v545 = vmax.f32 %v537, 0.0
    %v546 = vmax.f32 %v538, 0.0
    %v547 = vmax.f32 %v539, 0.0
    %v548 = vmax.f32 %v540, 0.0
    %v549 = vmax.f32 %v541, 0.0
    %v550 = vmax.f32 %v542, 0.0
    %v551 = vmax.f32 %v543, 0.0
    %v552 = vmax.f32 %v544, 0.0
    %553 = vmatprep.subr.mxu0 0.0
    %554 = vmatpush1.msra.mxu0 0.0
    %555 = vmatprep.subr.mxu0 0.0
    %556 = vmatpush1.msra.mxu0 0.0
    %557 = vmatprep.subr.mxu0 0.0
    %558 = vmatpush1.msra.mxu0 0.0
    %559 = vmatprep.subr.mxu0 0.0
    %560 = vmatpush1.msra.mxu0 0.0
    %561 = vmatprep.subr.mxu0 0.0
    %562 = vmatpush1.msra.mxu0 0.0
    %563 = vmatprep.subr.mxu0 0.0
    %564 = vmatpush1.msra.mxu0 0.0
    %565 = vmatprep.subr.mxu0 0.0
    %566 = vmatpush1.msra.mxu0 0.0
    %567 = vmatprep.subr.mxu0 0.0
    %568 = vmatpush1.msra.mxu0 0.0
    %569 = vmatprep.subr.mxu0 0.0
    %570 = vmatpush1.msra.mxu0 %v552
    %571 = vmatprep.subr.mxu0 0.0
    %572 = vmatpush1.msra.mxu0 %v551
    %573 = vmatprep.subr.mxu0 0.0
    %574 = vmatpush1.msra.mxu0 %v550
    %575 = vmatprep.subr.mxu0 0.0
    %576 = vmatpush1.msra.mxu0 %v549
    %577 = vmatprep.subr.mxu0 0.0
    %578 = vmatpush1.msra.mxu0 %v548
    %579 = vmatprep.subr.mxu0 0.0
    %580 = vmatpush1.msra.mxu0 %v547
    %581 = vmatprep.subr.mxu0 0.0
    %582 = vmatpush1.msra.mxu0 %v546
    %583 = vmatprep.subr.mxu0 0.0
    %584 = vmatpush1.msra.mxu0 %v545
    %585 = vmatprep.subr.mxu0 0.0
    %586 = vmatpush2.msra.mxu0 0.0
    %587 = vmatprep.subr.mxu0 0.0
    %588 = vmatpush2.msra.mxu0 0.0
    %589 = vmatprep.subr.mxu0 0.0
    %590 = vmatpush2.msra.mxu0 0.0
    %591 = vmatprep.subr.mxu0 0.0
    %592 = vmatpush2.msra.mxu0 0.0
    %593 = vmatprep.subr.mxu0 0.0
    %594 = vmatpush2.msra.mxu0 0.0
    %595 = vmatprep.subr.mxu0 0.0
    %596 = vmatpush2.msra.mxu0 0.0
    %597 = vmatprep.subr.mxu0 0.0
    %598 = vmatpush2.msra.mxu0 0.0
    %599 = vmatprep.subr.mxu0 0.0
    %600 = vmatpush2.msra.mxu0 0.0
    %601 = vmatprep.subr.mxu0 0.0
    %602 = vmatpush2.msra.mxu0 0.0
    %603 = vmatprep.subr.mxu0 0.0
    %604 = vmatpush2.msra.mxu0 0.0
    %605 = vmatprep.subr.mxu0 0.0
    %606 = vmatpush2.msra.mxu0 0.0
    %607 = vmatprep.subr.mxu0 0.0
    %608 = vmatpush2.msra.mxu0 0.0
    %609 = vmatprep.subr.mxu0 0.0
    %610 = vmatpush2.msra.mxu0 0.0
    %611 = vmatprep.subr.mxu0 0.0
    %612 = vmatpush2.msra.mxu0 0.0
    %613 = vmatprep.subr.mxu0 0.0
    %614 = vmatpush2.msra.mxu0 0.0
    %615 = vmatprep.subr.mxu0 0.0
    %616 = vmatpush2.msra.mxu0 0.0
    %617 = vmatprep.mubr.f32.mxu0 0.0
    %618 = vmatmul.mubr.f32.gmra.mxu0 %v203
    %v619 = vpop.f32.mrf.mxu0
    %v620 = vadd.f32 %v101, %v619
    %v621 = vpop.f32.mrf.mxu0
    %622 = vmatprep.mubr.f32.mxu0 0.0
    %623 = vmatmul.mubr.f32.gmra.mxu0 %v206
    %v624 = vpop.f32.mrf.mxu0
    %v625 = vadd.f32 %v105, %v624
    %v626 = vpop.f32.mrf.mxu0
    %627 = vmatprep.mubr.f32.mxu0 0.0
    %628 = vmatmul.mubr.f32.gmra.mxu0 %v209
    %v629 = vpop.f32.mrf.mxu0
    %v630 = vadd.f32 %v109, %v629
    %v631 = vpop.f32.mrf.mxu0
    %632 = vmatprep.mubr.f32.mxu0 0.0
    %633 = vmatmul.mubr.f32.gmra.mxu0 %v212
    %v634 = vpop.f32.mrf.mxu0
    %v635 = vadd.f32 %v113, %v634
    %v636 = vpop.f32.mrf.mxu0
    %637 = vmatprep.mubr.f32.mxu0 0.0
    %638 = vmatmul.mubr.f32.gmra.mxu0 %v215
    %v639 = vpop.f32.mrf.mxu0
    %v640 = vadd.f32 %v117, %v639
    %v641 = vpop.f32.mrf.mxu0
    %642 = vmatprep.mubr.f32.mxu0 0.0
    %643 = vmatmul.mubr.f32.gmra.mxu0 %v218
    %v644 = vpop.f32.mrf.mxu0
    %v645 = vadd.f32 %v121, %v644
    %v646 = vpop.f32.mrf.mxu0
    %647 = vmatprep.mubr.f32.mxu0 0.0
    %648 = vmatmul.mubr.f32.gmra.mxu0 %v221
    %v649 = vpop.f32.mrf.mxu0
    %v650 = vadd.f32 %v125, %v649
    %v651 = vpop.f32.mrf.mxu0
    %652 = vmatprep.mubr.f32.mxu0 0.0
    %653 = vmatmul.mubr.f32.gmra.mxu0 %v224
    %v654 = vpop.f32.mrf.mxu0
    %v655 = vadd.f32 %v129, %v654
    %v656 = vpop.f32.mrf.mxu0
    %657 = vdwg.mxu0
    %v658 = vmax.f32 %v620, 0.0
    %v659 = vmax.f32 %v625, 0.0
    %v660 = vmax.f32 %v630, 0.0
    %v661 = vmax.f32 %v635, 0.0
    %v662 = vmax.f32 %v640, 0.0
    %v663 = vmax.f32 %v645, 0.0
    %v664 = vmax.f32 %v650, 0.0
    %v665 = vmax.f32 %v655, 0.0
    %v666 = vmul.f32 %v658, %v133
    %v667 = vmul.f32 %v659, %v137
    %v668 = vmul.f32 %v660, %v141
    %v669 = vmul.f32 %v661, %v145
    %v670 = vmul.f32 %v662, %v149
    %v671 = vmul.f32 %v663, %v153
    %v672 = vmul.f32 %v664, %v157
    %v673 = vmul.f32 %v665, %v161
    %v674 = vadd.f32 %v666, %v667
    %v675 = vadd.f32 %v674, %v668
    %v676 = vadd.f32 %v675, %v669
    %v677 = vadd.f32 %v676, %v670
    %v678 = vadd.f32 %v677, %v671
    %v679 = vadd.f32 %v678, %v672
    %v680 = vadd.f32 %v679, %v673
    %v681 = vrot.slane %v680, 4
    %v682 = vadd.f32 %v680, %v681
    %v683 = vrot.slane %v682, 2
    %v684 = vadd.f32 %v682, %v683
    %v685 = vrot.slane %v684, 1
    %v686 = vadd.f32 %v684, %v685
    %v687 = vadd.f32 %v686, %v360
    %v688 = vlaneseq
    %v689 = vshrl.u32 %v688, 7
    %v690 = vsub.s32 3, %v689
    %v691 = vrot.slane %v172, %v690
    %v692 = vmul.f32 %v30, %v691
    %v693 = vmul.f32 %v35, %v691
    %v694 = vmul.f32 %v40, %v691
    %v695 = vmul.f32 %v45, %v691
    %v696 = vmul.f32 %v50, %v691
    %v697 = vmul.f32 %v55, %v691
    %v698 = vmul.f32 %v60, %v691
    %v699 = vmul.f32 %v65, %v691
    %v700 = vadd.f32 %v692, %v69
    %v701 = vadd.f32 %v693, %v73
    %v702 = vadd.f32 %v694, %v77
    %v703 = vadd.f32 %v695, %v81
    %v704 = vadd.f32 %v696, %v85
    %v705 = vadd.f32 %v697, %v89
    %v706 = vadd.f32 %v698, %v93
    %v707 = vadd.f32 %v699, %v97
    %v708 = vmax.f32 %v700, 0.0
    %v709 = vmax.f32 %v701, 0.0
    %v710 = vmax.f32 %v702, 0.0
    %v711 = vmax.f32 %v703, 0.0
    %v712 = vmax.f32 %v704, 0.0
    %v713 = vmax.f32 %v705, 0.0
    %v714 = vmax.f32 %v706, 0.0
    %v715 = vmax.f32 %v707, 0.0
    %716 = vmatprep.subr.mxu0 0.0
    %717 = vmatpush1.msra.mxu0 0.0
    %718 = vmatprep.subr.mxu0 0.0
    %719 = vmatpush1.msra.mxu0 0.0
    %720 = vmatprep.subr.mxu0 0.0
    %721 = vmatpush1.msra.mxu0 0.0
    %722 = vmatprep.subr.mxu0 0.0
    %723 = vmatpush1.msra.mxu0 0.0
    %724 = vmatprep.subr.mxu0 0.0
    %725 = vmatpush1.msra.mxu0 0.0
    %726 = vmatprep.subr.mxu0 0.0
    %727 = vmatpush1.msra.mxu0 0.0
    %728 = vmatprep.subr.mxu0 0.0
    %729 = vmatpush1.msra.mxu0 0.0
    %730 = vmatprep.subr.mxu0 0.0
    %731 = vmatpush1.msra.mxu0 0.0
    %732 = vmatprep.subr.mxu0 0.0
    %733 = vmatpush1.msra.mxu0 %v715
    %734 = vmatprep.subr.mxu0 0.0
    %735 = vmatpush1.msra.mxu0 %v714
    %736 = vmatprep.subr.mxu0 0.0
    %737 = vmatpush1.msra.mxu0 %v713
    %738 = vmatprep.subr.mxu0 0.0
    %739 = vmatpush1.msra.mxu0 %v712
    %740 = vmatprep.subr.mxu0 0.0
    %741 = vmatpush1.msra.mxu0 %v711
    %742 = vmatprep.subr.mxu0 0.0
    %743 = vmatpush1.msra.mxu0 %v710
    %744 = vmatprep.subr.mxu0 0.0
    %745 = vmatpush1.msra.mxu0 %v709
    %746 = vmatprep.subr.mxu0 0.0
    %747 = vmatpush1.msra.mxu0 %v708
    %748 = vmatprep.subr.mxu0 0.0
    %749 = vmatpush2.msra.mxu0 0.0
    %750 = vmatprep.subr.mxu0 0.0
    %751 = vmatpush2.msra.mxu0 0.0
    %752 = vmatprep.subr.mxu0 0.0
    %753 = vmatpush2.msra.mxu0 0.0
    %754 = vmatprep.subr.mxu0 0.0
    %755 = vmatpush2.msra.mxu0 0.0
    %756 = vmatprep.subr.mxu0 0.0
    %757 = vmatpush2.msra.mxu0 0.0
    %758 = vmatprep.subr.mxu0 0.0
    %759 = vmatpush2.msra.mxu0 0.0
    %760 = vmatprep.subr.mxu0 0.0
    %761 = vmatpush2.msra.mxu0 0.0
    %762 = vmatprep.subr.mxu0 0.0
    %763 = vmatpush2.msra.mxu0 0.0
    %764 = vmatprep.subr.mxu0 0.0
    %765 = vmatpush2.msra.mxu0 0.0
    %766 = vmatprep.subr.mxu0 0.0
    %767 = vmatpush2.msra.mxu0 0.0
    %768 = vmatprep.subr.mxu0 0.0
    %769 = vmatpush2.msra.mxu0 0.0
    %770 = vmatprep.subr.mxu0 0.0
    %771 = vmatpush2.msra.mxu0 0.0
    %772 = vmatprep.subr.mxu0 0.0
    %773 = vmatpush2.msra.mxu0 0.0
    %774 = vmatprep.subr.mxu0 0.0
    %775 = vmatpush2.msra.mxu0 0.0
    %776 = vmatprep.subr.mxu0 0.0
    %777 = vmatpush2.msra.mxu0 0.0
    %778 = vmatprep.subr.mxu0 0.0
    %779 = vmatpush2.msra.mxu0 0.0
    %780 = vmatprep.mubr.f32.mxu0 0.0
    %781 = vmatmul.mubr.f32.gmra.mxu0 %v203
    %v782 = vpop.f32.mrf.mxu0
    %v783 = vadd.f32 %v101, %v782
    %v784 = vpop.f32.mrf.mxu0
    %785 = vmatprep.mubr.f32.mxu0 0.0
    %786 = vmatmul.mubr.f32.gmra.mxu0 %v206
    %v787 = vpop.f32.mrf.mxu0
    %v788 = vadd.f32 %v105, %v787
    %v789 = vpop.f32.mrf.mxu0
    %790 = vmatprep.mubr.f32.mxu0 0.0
    %791 = vmatmul.mubr.f32.gmra.mxu0 %v209
    %v792 = vpop.f32.mrf.mxu0
    %v793 = vadd.f32 %v109, %v792
    %v794 = vpop.f32.mrf.mxu0
    %795 = vmatprep.mubr.f32.mxu0 0.0
    %796 = vmatmul.mubr.f32.gmra.mxu0 %v212
    %v797 = vpop.f32.mrf.mxu0
    %v798 = vadd.f32 %v113, %v797
    %v799 = vpop.f32.mrf.mxu0
    %800 = vmatprep.mubr.f32.mxu0 0.0
    %801 = vmatmul.mubr.f32.gmra.mxu0 %v215
    %v802 = vpop.f32.mrf.mxu0
    %v803 = vadd.f32 %v117, %v802
    %v804 = vpop.f32.mrf.mxu0
    %805 = vmatprep.mubr.f32.mxu0 0.0
    %806 = vmatmul.mubr.f32.gmra.mxu0 %v218
    %v807 = vpop.f32.mrf.mxu0
    %v808 = vadd.f32 %v121, %v807
    %v809 = vpop.f32.mrf.mxu0
    %810 = vmatprep.mubr.f32.mxu0 0.0
    %811 = vmatmul.mubr.f32.gmra.mxu0 %v221
    %v812 = vpop.f32.mrf.mxu0
    %v813 = vadd.f32 %v125, %v812
    %v814 = vpop.f32.mrf.mxu0
    %815 = vmatprep.mubr.f32.mxu0 0.0
    %816 = vmatmul.mubr.f32.gmra.mxu0 %v224
    %v817 = vpop.f32.mrf.mxu0
    %v818 = vadd.f32 %v129, %v817
    %v819 = vpop.f32.mrf.mxu0
    %820 = vdwg.mxu0
    %v821 = vmax.f32 %v783, 0.0
    %v822 = vmax.f32 %v788, 0.0
    %v823 = vmax.f32 %v793, 0.0
    %v824 = vmax.f32 %v798, 0.0
    %v825 = vmax.f32 %v803, 0.0
    %v826 = vmax.f32 %v808, 0.0
    %v827 = vmax.f32 %v813, 0.0
    %v828 = vmax.f32 %v818, 0.0
    %v829 = vmul.f32 %v821, %v133
    %v830 = vmul.f32 %v822, %v137
    %v831 = vmul.f32 %v823, %v141
    %v832 = vmul.f32 %v824, %v145
    %v833 = vmul.f32 %v825, %v149
    %v834 = vmul.f32 %v826, %v153
    %v835 = vmul.f32 %v827, %v157
    %v836 = vmul.f32 %v828, %v161
    %v837 = vadd.f32 %v829, %v830
    %v838 = vadd.f32 %v837, %v831
    %v839 = vadd.f32 %v838, %v832
    %v840 = vadd.f32 %v839, %v833
    %v841 = vadd.f32 %v840, %v834
    %v842 = vadd.f32 %v841, %v835
    %v843 = vadd.f32 %v842, %v836
    %v844 = vrot.slane %v843, 4
    %v845 = vadd.f32 %v843, %v844
    %v846 = vrot.slane %v845, 2
    %v847 = vadd.f32 %v845, %v846
    %v848 = vrot.slane %v847, 1
    %v849 = vadd.f32 %v847, %v848
    %v850 = vadd.f32 %v849, %v360
    %v851 = vlaneseq
    %v852 = vshrl.u32 %v851, 7
    %v853 = vsub.s32 4, %v852
    %v854 = vrot.slane %v172, %v853
    %v855 = vmul.f32 %v30, %v854
    %v856 = vmul.f32 %v35, %v854
    %v857 = vmul.f32 %v40, %v854
    %v858 = vmul.f32 %v45, %v854
    %v859 = vmul.f32 %v50, %v854
    %v860 = vmul.f32 %v55, %v854
    %v861 = vmul.f32 %v60, %v854
    %v862 = vmul.f32 %v65, %v854
    %v863 = vadd.f32 %v855, %v69
    %v864 = vadd.f32 %v856, %v73
    %v865 = vadd.f32 %v857, %v77
    %v866 = vadd.f32 %v858, %v81
    %v867 = vadd.f32 %v859, %v85
    %v868 = vadd.f32 %v860, %v89
    %v869 = vadd.f32 %v861, %v93
    %v870 = vadd.f32 %v862, %v97
    %v871 = vmax.f32 %v863, 0.0
    %v872 = vmax.f32 %v864, 0.0
    %v873 = vmax.f32 %v865, 0.0
    %v874 = vmax.f32 %v866, 0.0
    %v875 = vmax.f32 %v867, 0.0
    %v876 = vmax.f32 %v868, 0.0
    %v877 = vmax.f32 %v869, 0.0
    %v878 = vmax.f32 %v870, 0.0
    %879 = vmatprep.subr.mxu0 0.0
    %880 = vmatpush1.msra.mxu0 0.0
    %881 = vmatprep.subr.mxu0 0.0
    %882 = vmatpush1.msra.mxu0 0.0
    %883 = vmatprep.subr.mxu0 0.0
    %884 = vmatpush1.msra.mxu0 0.0
    %885 = vmatprep.subr.mxu0 0.0
    %886 = vmatpush1.msra.mxu0 0.0
    %887 = vmatprep.subr.mxu0 0.0
    %888 = vmatpush1.msra.mxu0 0.0
    %889 = vmatprep.subr.mxu0 0.0
    %890 = vmatpush1.msra.mxu0 0.0
    %891 = vmatprep.subr.mxu0 0.0
    %892 = vmatpush1.msra.mxu0 0.0
    %893 = vmatprep.subr.mxu0 0.0
    %894 = vmatpush1.msra.mxu0 0.0
    %895 = vmatprep.subr.mxu0 0.0
    %896 = vmatpush1.msra.mxu0 %v878
    %897 = vmatprep.subr.mxu0 0.0
    %898 = vmatpush1.msra.mxu0 %v877
    %899 = vmatprep.subr.mxu0 0.0
    %900 = vmatpush1.msra.mxu0 %v876
    %901 = vmatprep.subr.mxu0 0.0
    %902 = vmatpush1.msra.mxu0 %v875
    %903 = vmatprep.subr.mxu0 0.0
    %904 = vmatpush1.msra.mxu0 %v874
    %905 = vmatprep.subr.mxu0 0.0
    %906 = vmatpush1.msra.mxu0 %v873
    %907 = vmatprep.subr.mxu0 0.0
    %908 = vmatpush1.msra.mxu0 %v872
    %909 = vmatprep.subr.mxu0 0.0
    %910 = vmatpush1.msra.mxu0 %v871
    %911 = vmatprep.subr.mxu0 0.0
    %912 = vmatpush2.msra.mxu0 0.0
    %913 = vmatprep.subr.mxu0 0.0
    %914 = vmatpush2.msra.mxu0 0.0
    %915 = vmatprep.subr.mxu0 0.0
    %916 = vmatpush2.msra.mxu0 0.0
    %917 = vmatprep.subr.mxu0 0.0
    %918 = vmatpush2.msra.mxu0 0.0
    %919 = vmatprep.subr.mxu0 0.0
    %920 = vmatpush2.msra.mxu0 0.0
    %921 = vmatprep.subr.mxu0 0.0
    %922 = vmatpush2.msra.mxu0 0.0
    %923 = vmatprep.subr.mxu0 0.0
    %924 = vmatpush2.msra.mxu0 0.0
    %925 = vmatprep.subr.mxu0 0.0
    %926 = vmatpush2.msra.mxu0 0.0
    %927 = vmatprep.subr.mxu0 0.0
    %928 = vmatpush2.msra.mxu0 0.0
    %929 = vmatprep.subr.mxu0 0.0
    %930 = vmatpush2.msra.mxu0 0.0
    %931 = vmatprep.subr.mxu0 0.0
    %932 = vmatpush2.msra.mxu0 0.0
    %933 = vmatprep.subr.mxu0 0.0
    %934 = vmatpush2.msra.mxu0 0.0
    %935 = vmatprep.subr.mxu0 0.0
    %936 = vmatpush2.msra.mxu0 0.0
    %937 = vmatprep.subr.mxu0 0.0
    %938 = vmatpush2.msra.mxu0 0.0
    %939 = vmatprep.subr.mxu0 0.0
    %940 = vmatpush2.msra.mxu0 0.0
    %941 = vmatprep.subr.mxu0 0.0
    %942 = vmatpush2.msra.mxu0 0.0
    %943 = vmatprep.mubr.f32.mxu0 0.0
    %944 = vmatmul.mubr.f32.gmra.mxu0 %v203
    %v945 = vpop.f32.mrf.mxu0
    %v946 = vadd.f32 %v101, %v945
    %v947 = vpop.f32.mrf.mxu0
    %948 = vmatprep.mubr.f32.mxu0 0.0
    %949 = vmatmul.mubr.f32.gmra.mxu0 %v206
    %v950 = vpop.f32.mrf.mxu0
    %v951 = vadd.f32 %v105, %v950
    %v952 = vpop.f32.mrf.mxu0
    %953 = vmatprep.mubr.f32.mxu0 0.0
    %954 = vmatmul.mubr.f32.gmra.mxu0 %v209
    %v955 = vpop.f32.mrf.mxu0
    %v956 = vadd.f32 %v109, %v955
    %v957 = vpop.f32.mrf.mxu0
    %958 = vmatprep.mubr.f32.mxu0 0.0
    %959 = vmatmul.mubr.f32.gmra.mxu0 %v212
    %v960 = vpop.f32.mrf.mxu0
    %v961 = vadd.f32 %v113, %v960
    %v962 = vpop.f32.mrf.mxu0
    %963 = vmatprep.mubr.f32.mxu0 0.0
    %964 = vmatmul.mubr.f32.gmra.mxu0 %v215
    %v965 = vpop.f32.mrf.mxu0
    %v966 = vadd.f32 %v117, %v965
    %v967 = vpop.f32.mrf.mxu0
    %968 = vmatprep.mubr.f32.mxu0 0.0
    %969 = vmatmul.mubr.f32.gmra.mxu0 %v218
    %v970 = vpop.f32.mrf.mxu0
    %v971 = vadd.f32 %v121, %v970
    %v972 = vpop.f32.mrf.mxu0
    %973 = vmatprep.mubr.f32.mxu0 0.0
    %974 = vmatmul.mubr.f32.gmra.mxu0 %v221
    %v975 = vpop.f32.mrf.mxu0
    %v976 = vadd.f32 %v125, %v975
    %v977 = vpop.f32.mrf.mxu0
    %978 = vmatprep.mubr.f32.mxu0 0.0
    %979 = vmatmul.mubr.f32.gmra.mxu0 %v224
    %v980 = vpop.f32.mrf.mxu0
    %v981 = vadd.f32 %v129, %v980
    %v982 = vpop.f32.mrf.mxu0
    %983 = vdwg.mxu0
    %v984 = vmax.f32 %v946, 0.0
    %v985 = vmax.f32 %v951, 0.0
    %v986 = vmax.f32 %v956, 0.0
    %v987 = vmax.f32 %v961, 0.0
    %v988 = vmax.f32 %v966, 0.0
    %v989 = vmax.f32 %v971, 0.0
    %v990 = vmax.f32 %v976, 0.0
    %v991 = vmax.f32 %v981, 0.0
    %v992 = vmul.f32 %v984, %v133
    %v993 = vmul.f32 %v985, %v137
    %v994 = vmul.f32 %v986, %v141
    %v995 = vmul.f32 %v987, %v145
    %v996 = vmul.f32 %v988, %v149
    %v997 = vmul.f32 %v989, %v153
    %v998 = vmul.f32 %v990, %v157
    %v999 = vmul.f32 %v991, %v161
    %v1000 = vadd.f32 %v992, %v993
    %v1001 = vadd.f32 %v1000, %v994
    %v1002 = vadd.f32 %v1001, %v995
    %v1003 = vadd.f32 %v1002, %v996
    %v1004 = vadd.f32 %v1003, %v997
    %v1005 = vadd.f32 %v1004, %v998
    %v1006 = vadd.f32 %v1005, %v999
    %v1007 = vrot.slane %v1006, 4
    %v1008 = vadd.f32 %v1006, %v1007
    %v1009 = vrot.slane %v1008, 2
    %v1010 = vadd.f32 %v1008, %v1009
    %v1011 = vrot.slane %v1010, 1
    %v1012 = vadd.f32 %v1010, %v1011
    %v1013 = vadd.f32 %v1012, %v360
    %v1014 = vlaneseq
    %v1015 = vshrl.u32 %v1014, 7
    %v1016 = vsub.s32 5, %v1015
    %v1017 = vrot.slane %v172, %v1016
    %v1018 = vmul.f32 %v30, %v1017
    %v1019 = vmul.f32 %v35, %v1017
    %v1020 = vmul.f32 %v40, %v1017
    %v1021 = vmul.f32 %v45, %v1017
    %v1022 = vmul.f32 %v50, %v1017
    %v1023 = vmul.f32 %v55, %v1017
    %v1024 = vmul.f32 %v60, %v1017
    %v1025 = vmul.f32 %v65, %v1017
    %v1026 = vadd.f32 %v1018, %v69
    %v1027 = vadd.f32 %v1019, %v73
    %v1028 = vadd.f32 %v1020, %v77
    %v1029 = vadd.f32 %v1021, %v81
    %v1030 = vadd.f32 %v1022, %v85
    %v1031 = vadd.f32 %v1023, %v89
    %v1032 = vadd.f32 %v1024, %v93
    %v1033 = vadd.f32 %v1025, %v97
    %v1034 = vmax.f32 %v1026, 0.0
    %v1035 = vmax.f32 %v1027, 0.0
    %v1036 = vmax.f32 %v1028, 0.0
    %v1037 = vmax.f32 %v1029, 0.0
    %v1038 = vmax.f32 %v1030, 0.0
    %v1039 = vmax.f32 %v1031, 0.0
    %v1040 = vmax.f32 %v1032, 0.0
    %v1041 = vmax.f32 %v1033, 0.0
    %1042 = vmatprep.subr.mxu0 0.0
    %1043 = vmatpush1.msra.mxu0 0.0
    %1044 = vmatprep.subr.mxu0 0.0
    %1045 = vmatpush1.msra.mxu0 0.0
    %1046 = vmatprep.subr.mxu0 0.0
    %1047 = vmatpush1.msra.mxu0 0.0
    %1048 = vmatprep.subr.mxu0 0.0
    %1049 = vmatpush1.msra.mxu0 0.0
    %1050 = vmatprep.subr.mxu0 0.0
    %1051 = vmatpush1.msra.mxu0 0.0
    %1052 = vmatprep.subr.mxu0 0.0
    %1053 = vmatpush1.msra.mxu0 0.0
    %1054 = vmatprep.subr.mxu0 0.0
    %1055 = vmatpush1.msra.mxu0 0.0
    %1056 = vmatprep.subr.mxu0 0.0
    %1057 = vmatpush1.msra.mxu0 0.0
    %1058 = vmatprep.subr.mxu0 0.0
    %1059 = vmatpush1.msra.mxu0 %v1041
    %1060 = vmatprep.subr.mxu0 0.0
    %1061 = vmatpush1.msra.mxu0 %v1040
    %1062 = vmatprep.subr.mxu0 0.0
    %1063 = vmatpush1.msra.mxu0 %v1039
    %1064 = vmatprep.subr.mxu0 0.0
    %1065 = vmatpush1.msra.mxu0 %v1038
    %1066 = vmatprep.subr.mxu0 0.0
    %1067 = vmatpush1.msra.mxu0 %v1037
    %1068 = vmatprep.subr.mxu0 0.0
    %1069 = vmatpush1.msra.mxu0 %v1036
    %1070 = vmatprep.subr.mxu0 0.0
    %1071 = vmatpush1.msra.mxu0 %v1035
    %1072 = vmatprep.subr.mxu0 0.0
    %1073 = vmatpush1.msra.mxu0 %v1034
    %1074 = vmatprep.subr.mxu0 0.0
    %1075 = vmatpush2.msra.mxu0 0.0
    %1076 = vmatprep.subr.mxu0 0.0
    %1077 = vmatpush2.msra.mxu0 0.0
    %1078 = vmatprep.subr.mxu0 0.0
    %1079 = vmatpush2.msra.mxu0 0.0
    %1080 = vmatprep.subr.mxu0 0.0
    %1081 = vmatpush2.msra.mxu0 0.0
    %1082 = vmatprep.subr.mxu0 0.0
    %1083 = vmatpush2.msra.mxu0 0.0
    %1084 = vmatprep.subr.mxu0 0.0
    %1085 = vmatpush2.msra.mxu0 0.0
    %1086 = vmatprep.subr.mxu0 0.0
    %1087 = vmatpush2.msra.mxu0 0.0
    %1088 = vmatprep.subr.mxu0 0.0
    %1089 = vmatpush2.msra.mxu0 0.0
    %1090 = vmatprep.subr.mxu0 0.0
    %1091 = vmatpush2.msra.mxu0 0.0
    %1092 = vmatprep.subr.mxu0 0.0
    %1093 = vmatpush2.msra.mxu0 0.0
    %1094 = vmatprep.subr.mxu0 0.0
    %1095 = vmatpush2.msra.mxu0 0.0
    %1096 = vmatprep.subr.mxu0 0.0
    %1097 = vmatpush2.msra.mxu0 0.0
    %1098 = vmatprep.subr.mxu0 0.0
    %1099 = vmatpush2.msra.mxu0 0.0
    %1100 = vmatprep.subr.mxu0 0.0
    %1101 = vmatpush2.msra.mxu0 0.0
    %1102 = vmatprep.subr.mxu0 0.0
    %1103 = vmatpush2.msra.mxu0 0.0
    %1104 = vmatprep.subr.mxu0 0.0
    %1105 = vmatpush2.msra.mxu0 0.0
    %1106 = vmatprep.mubr.f32.mxu0 0.0
    %1107 = vmatmul.mubr.f32.gmra.mxu0 %v203
    %v1108 = vpop.f32.mrf.mxu0
    %v1109 = vadd.f32 %v101, %v1108
    %v1110 = vpop.f32.mrf.mxu0
    %1111 = vmatprep.mubr.f32.mxu0 0.0
    %1112 = vmatmul.mubr.f32.gmra.mxu0 %v206
    %v1113 = vpop.f32.mrf.mxu0
    %v1114 = vadd.f32 %v105, %v1113
    %v1115 = vpop.f32.mrf.mxu0
    %1116 = vmatprep.mubr.f32.mxu0 0.0
    %1117 = vmatmul.mubr.f32.gmra.mxu0 %v209
    %v1118 = vpop.f32.mrf.mxu0
    %v1119 = vadd.f32 %v109, %v1118
    %v1120 = vpop.f32.mrf.mxu0
    %1121 = vmatprep.mubr.f32.mxu0 0.0
    %1122 = vmatmul.mubr.f32.gmra.mxu0 %v212
    %v1123 = vpop.f32.mrf.mxu0
    %v1124 = vadd.f32 %v113, %v1123
    %v1125 = vpop.f32.mrf.mxu0
    %1126 = vmatprep.mubr.f32.mxu0 0.0
    %1127 = vmatmul.mubr.f32.gmra.mxu0 %v215
    %v1128 = vpop.f32.mrf.mxu0
    %v1129 = vadd.f32 %v117, %v1128
    %v1130 = vpop.f32.mrf.mxu0
    %1131 = vmatprep.mubr.f32.mxu0 0.0
    %1132 = vmatmul.mubr.f32.gmra.mxu0 %v218
    %v1133 = vpop.f32.mrf.mxu0
    %v1134 = vadd.f32 %v121, %v1133
    %v1135 = vpop.f32.mrf.mxu0
    %1136 = vmatprep.mubr.f32.mxu0 0.0
    %1137 = vmatmul.mubr.f32.gmra.mxu0 %v221
    %v1138 = vpop.f32.mrf.mxu0
    %v1139 = vadd.f32 %v125, %v1138
    %v1140 = vpop.f32.mrf.mxu0
    %1141 = vmatprep.mubr.f32.mxu0 0.0
    %1142 = vmatmul.mubr.f32.gmra.mxu0 %v224
    %v1143 = vpop.f32.mrf.mxu0
    %v1144 = vadd.f32 %v129, %v1143
    %v1145 = vpop.f32.mrf.mxu0
    %1146 = vdwg.mxu0
    %v1147 = vmax.f32 %v1109, 0.0
    %v1148 = vmax.f32 %v1114, 0.0
    %v1149 = vmax.f32 %v1119, 0.0
    %v1150 = vmax.f32 %v1124, 0.0
    %v1151 = vmax.f32 %v1129, 0.0
    %v1152 = vmax.f32 %v1134, 0.0
    %v1153 = vmax.f32 %v1139, 0.0
    %v1154 = vmax.f32 %v1144, 0.0
    %v1155 = vmul.f32 %v1147, %v133
    %v1156 = vmul.f32 %v1148, %v137
    %v1157 = vmul.f32 %v1149, %v141
    %v1158 = vmul.f32 %v1150, %v145
    %v1159 = vmul.f32 %v1151, %v149
    %v1160 = vmul.f32 %v1152, %v153
    %v1161 = vmul.f32 %v1153, %v157
    %v1162 = vmul.f32 %v1154, %v161
    %v1163 = vadd.f32 %v1155, %v1156
    %v1164 = vadd.f32 %v1163, %v1157
    %v1165 = vadd.f32 %v1164, %v1158
    %v1166 = vadd.f32 %v1165, %v1159
    %v1167 = vadd.f32 %v1166, %v1160
    %v1168 = vadd.f32 %v1167, %v1161
    %v1169 = vadd.f32 %v1168, %v1162
    %v1170 = vrot.slane %v1169, 4
    %v1171 = vadd.f32 %v1169, %v1170
    %v1172 = vrot.slane %v1171, 2
    %v1173 = vadd.f32 %v1171, %v1172
    %v1174 = vrot.slane %v1173, 1
    %v1175 = vadd.f32 %v1173, %v1174
    %v1176 = vadd.f32 %v1175, %v360
    %v1177 = vlaneseq
    %v1178 = vshrl.u32 %v1177, 7
    %v1179 = vsub.s32 6, %v1178
    %v1180 = vrot.slane %v172, %v1179
    %v1181 = vmul.f32 %v30, %v1180
    %v1182 = vmul.f32 %v35, %v1180
    %v1183 = vmul.f32 %v40, %v1180
    %v1184 = vmul.f32 %v45, %v1180
    %v1185 = vmul.f32 %v50, %v1180
    %v1186 = vmul.f32 %v55, %v1180
    %v1187 = vmul.f32 %v60, %v1180
    %v1188 = vmul.f32 %v65, %v1180
    %v1189 = vadd.f32 %v1181, %v69
    %v1190 = vadd.f32 %v1182, %v73
    %v1191 = vadd.f32 %v1183, %v77
    %v1192 = vadd.f32 %v1184, %v81
    %v1193 = vadd.f32 %v1185, %v85
    %v1194 = vadd.f32 %v1186, %v89
    %v1195 = vadd.f32 %v1187, %v93
    %v1196 = vadd.f32 %v1188, %v97
    %v1197 = vmax.f32 %v1189, 0.0
    %v1198 = vmax.f32 %v1190, 0.0
    %v1199 = vmax.f32 %v1191, 0.0
    %v1200 = vmax.f32 %v1192, 0.0
    %v1201 = vmax.f32 %v1193, 0.0
    %v1202 = vmax.f32 %v1194, 0.0
    %v1203 = vmax.f32 %v1195, 0.0
    %v1204 = vmax.f32 %v1196, 0.0
    %1205 = vmatprep.subr.mxu0 0.0
    %1206 = vmatpush1.msra.mxu0 0.0
    %1207 = vmatprep.subr.mxu0 0.0
    %1208 = vmatpush1.msra.mxu0 0.0
    %1209 = vmatprep.subr.mxu0 0.0
    %1210 = vmatpush1.msra.mxu0 0.0
    %1211 = vmatprep.subr.mxu0 0.0
    %1212 = vmatpush1.msra.mxu0 0.0
    %1213 = vmatprep.subr.mxu0 0.0
    %1214 = vmatpush1.msra.mxu0 0.0
    %1215 = vmatprep.subr.mxu0 0.0
    %1216 = vmatpush1.msra.mxu0 0.0
    %1217 = vmatprep.subr.mxu0 0.0
    %1218 = vmatpush1.msra.mxu0 0.0
    %1219 = vmatprep.subr.mxu0 0.0
    %1220 = vmatpush1.msra.mxu0 0.0
    %1221 = vmatprep.subr.mxu0 0.0
    %1222 = vmatpush1.msra.mxu0 %v1204
    %1223 = vmatprep.subr.mxu0 0.0
    %1224 = vmatpush1.msra.mxu0 %v1203
    %1225 = vmatprep.subr.mxu0 0.0
    %1226 = vmatpush1.msra.mxu0 %v1202
    %1227 = vmatprep.subr.mxu0 0.0
    %1228 = vmatpush1.msra.mxu0 %v1201
    %1229 = vmatprep.subr.mxu0 0.0
    %1230 = vmatpush1.msra.mxu0 %v1200
    %1231 = vmatprep.subr.mxu0 0.0
    %1232 = vmatpush1.msra.mxu0 %v1199
    %1233 = vmatprep.subr.mxu0 0.0
    %1234 = vmatpush1.msra.mxu0 %v1198
    %1235 = vmatprep.subr.mxu0 0.0
    %1236 = vmatpush1.msra.mxu0 %v1197
    %1237 = vmatprep.subr.mxu0 0.0
    %1238 = vmatpush2.msra.mxu0 0.0
    %1239 = vmatprep.subr.mxu0 0.0
    %1240 = vmatpush2.msra.mxu0 0.0
    %1241 = vmatprep.subr.mxu0 0.0
    %1242 = vmatpush2.msra.mxu0 0.0
    %1243 = vmatprep.subr.mxu0 0.0
    %1244 = vmatpush2.msra.mxu0 0.0
    %1245 = vmatprep.subr.mxu0 0.0
    %1246 = vmatpush2.msra.mxu0 0.0
    %1247 = vmatprep.subr.mxu0 0.0
    %1248 = vmatpush2.msra.mxu0 0.0
    %1249 = vmatprep.subr.mxu0 0.0
    %1250 = vmatpush2.msra.mxu0 0.0
    %1251 = vmatprep.subr.mxu0 0.0
    %1252 = vmatpush2.msra.mxu0 0.0
    %1253 = vmatprep.subr.mxu0 0.0
    %1254 = vmatpush2.msra.mxu0 0.0
    %1255 = vmatprep.subr.mxu0 0.0
    %1256 = vmatpush2.msra.mxu0 0.0
    %1257 = vmatprep.subr.mxu0 0.0
    %1258 = vmatpush2.msra.mxu0 0.0
    %1259 = vmatprep.subr.mxu0 0.0
    %1260 = vmatpush2.msra.mxu0 0.0
    %1261 = vmatprep.subr.mxu0 0.0
    %1262 = vmatpush2.msra.mxu0 0.0
    %1263 = vmatprep.subr.mxu0 0.0
    %1264 = vmatpush2.msra.mxu0 0.0
    %1265 = vmatprep.subr.mxu0 0.0
    %1266 = vmatpush2.msra.mxu0 0.0
    %1267 = vmatprep.subr.mxu0 0.0
    %1268 = vmatpush2.msra.mxu0 0.0
    %1269 = vmatprep.mubr.f32.mxu0 0.0
    %1270 = vmatmul.mubr.f32.gmra.mxu0 %v203
    %v1271 = vpop.f32.mrf.mxu0
    %v1272 = vadd.f32 %v101, %v1271
    %v1273 = vpop.f32.mrf.mxu0
    %1274 = vmatprep.mubr.f32.mxu0 0.0
    %1275 = vmatmul.mubr.f32.gmra.mxu0 %v206
    %v1276 = vpop.f32.mrf.mxu0
    %v1277 = vadd.f32 %v105, %v1276
    %v1278 = vpop.f32.mrf.mxu0
    %1279 = vmatprep.mubr.f32.mxu0 0.0
    %1280 = vmatmul.mubr.f32.gmra.mxu0 %v209
    %v1281 = vpop.f32.mrf.mxu0
    %v1282 = vadd.f32 %v109, %v1281
    %v1283 = vpop.f32.mrf.mxu0
    %1284 = vmatprep.mubr.f32.mxu0 0.0
    %1285 = vmatmul.mubr.f32.gmra.mxu0 %v212
    %v1286 = vpop.f32.mrf.mxu0
    %v1287 = vadd.f32 %v113, %v1286
    %v1288 = vpop.f32.mrf.mxu0
    %1289 = vmatprep.mubr.f32.mxu0 0.0
    %1290 = vmatmul.mubr.f32.gmra.mxu0 %v215
    %v1291 = vpop.f32.mrf.mxu0
    %v1292 = vadd.f32 %v117, %v1291
    %v1293 = vpop.f32.mrf.mxu0
    %1294 = vmatprep.mubr.f32.mxu0 0.0
    %1295 = vmatmul.mubr.f32.gmra.mxu0 %v218
    %v1296 = vpop.f32.mrf.mxu0
    %v1297 = vadd.f32 %v121, %v1296
    %v1298 = vpop.f32.mrf.mxu0
    %1299 = vmatprep.mubr.f32.mxu0 0.0
    %1300 = vmatmul.mubr.f32.gmra.mxu0 %v221
    %v1301 = vpop.f32.mrf.mxu0
    %v1302 = vadd.f32 %v125, %v1301
    %v1303 = vpop.f32.mrf.mxu0
    %1304 = vmatprep.mubr.f32.mxu0 0.0
    %1305 = vmatmul.mubr.f32.gmra.mxu0 %v224
    %v1306 = vpop.f32.mrf.mxu0
    %v1307 = vadd.f32 %v129, %v1306
    %v1308 = vpop.f32.mrf.mxu0
    %1309 = vdwg.mxu0
    %v1310 = vmax.f32 %v1272, 0.0
    %v1311 = vmax.f32 %v1277, 0.0
    %v1312 = vmax.f32 %v1282, 0.0
    %v1313 = vmax.f32 %v1287, 0.0
    %v1314 = vmax.f32 %v1292, 0.0
    %v1315 = vmax.f32 %v1297, 0.0
    %v1316 = vmax.f32 %v1302, 0.0
    %v1317 = vmax.f32 %v1307, 0.0
    %v1318 = vmul.f32 %v1310, %v133
    %v1319 = vmul.f32 %v1311, %v137
    %v1320 = vmul.f32 %v1312, %v141
    %v1321 = vmul.f32 %v1313, %v145
    %v1322 = vmul.f32 %v1314, %v149
    %v1323 = vmul.f32 %v1315, %v153
    %v1324 = vmul.f32 %v1316, %v157
    %v1325 = vmul.f32 %v1317, %v161
    %v1326 = vadd.f32 %v1318, %v1319
    %v1327 = vadd.f32 %v1326, %v1320
    %v1328 = vadd.f32 %v1327, %v1321
    %v1329 = vadd.f32 %v1328, %v1322
    %v1330 = vadd.f32 %v1329, %v1323
    %v1331 = vadd.f32 %v1330, %v1324
    %v1332 = vadd.f32 %v1331, %v1325
    %v1333 = vrot.slane %v1332, 4
    %v1334 = vadd.f32 %v1332, %v1333
    %v1335 = vrot.slane %v1334, 2
    %v1336 = vadd.f32 %v1334, %v1335
    %v1337 = vrot.slane %v1336, 1
    %v1338 = vadd.f32 %v1336, %v1337
    %v1339 = vadd.f32 %v1338, %v360
    %v1340 = vlaneseq
    %v1341 = vshrl.u32 %v1340, 7
    %v1342 = vsub.s32 7, %v1341
    %v1343 = vrot.slane %v172, %v1342
    %v1344 = vmul.f32 %v30, %v1343
    %v1345 = vmul.f32 %v35, %v1343
    %v1346 = vmul.f32 %v40, %v1343
    %v1347 = vmul.f32 %v45, %v1343
    %v1348 = vmul.f32 %v50, %v1343
    %v1349 = vmul.f32 %v55, %v1343
    %v1350 = vmul.f32 %v60, %v1343
    %v1351 = vmul.f32 %v65, %v1343
    %v1352 = vadd.f32 %v1344, %v69
    %v1353 = vadd.f32 %v1345, %v73
    %v1354 = vadd.f32 %v1346, %v77
    %v1355 = vadd.f32 %v1347, %v81
    %v1356 = vadd.f32 %v1348, %v85
    %v1357 = vadd.f32 %v1349, %v89
    %v1358 = vadd.f32 %v1350, %v93
    %v1359 = vadd.f32 %v1351, %v97
    %v1360 = vmax.f32 %v1352, 0.0
    %v1361 = vmax.f32 %v1353, 0.0
    %v1362 = vmax.f32 %v1354, 0.0
    %v1363 = vmax.f32 %v1355, 0.0
    %v1364 = vmax.f32 %v1356, 0.0
    %v1365 = vmax.f32 %v1357, 0.0
    %v1366 = vmax.f32 %v1358, 0.0
    %v1367 = vmax.f32 %v1359, 0.0
    %1368 = vmatprep.subr.mxu0 0.0
    %1369 = vmatpush1.msra.mxu0 0.0
    %1370 = vmatprep.subr.mxu0 0.0
    %1371 = vmatpush1.msra.mxu0 0.0
    %1372 = vmatprep.subr.mxu0 0.0
    %1373 = vmatpush1.msra.mxu0 0.0
    %1374 = vmatprep.subr.mxu0 0.0
    %1375 = vmatpush1.msra.mxu0 0.0
    %1376 = vmatprep.subr.mxu0 0.0
    %1377 = vmatpush1.msra.mxu0 0.0
    %1378 = vmatprep.subr.mxu0 0.0
    %1379 = vmatpush1.msra.mxu0 0.0
    %1380 = vmatprep.subr.mxu0 0.0
    %1381 = vmatpush1.msra.mxu0 0.0
    %1382 = vmatprep.subr.mxu0 0.0
    %1383 = vmatpush1.msra.mxu0 0.0
    %1384 = vmatprep.subr.mxu0 0.0
    %1385 = vmatpush1.msra.mxu0 %v1367
    %1386 = vmatprep.subr.mxu0 0.0
    %1387 = vmatpush1.msra.mxu0 %v1366
    %1388 = vmatprep.subr.mxu0 0.0
    %1389 = vmatpush1.msra.mxu0 %v1365
    %1390 = vmatprep.subr.mxu0 0.0
    %1391 = vmatpush1.msra.mxu0 %v1364
    %1392 = vmatprep.subr.mxu0 0.0
    %1393 = vmatpush1.msra.mxu0 %v1363
    %1394 = vmatprep.subr.mxu0 0.0
    %1395 = vmatpush1.msra.mxu0 %v1362
    %1396 = vmatprep.subr.mxu0 0.0
    %1397 = vmatpush1.msra.mxu0 %v1361
    %1398 = vmatprep.subr.mxu0 0.0
    %1399 = vmatpush1.msra.mxu0 %v1360
    %1400 = vmatprep.subr.mxu0 0.0
    %1401 = vmatpush2.msra.mxu0 0.0
    %1402 = vmatprep.subr.mxu0 0.0
    %1403 = vmatpush2.msra.mxu0 0.0
    %1404 = vmatprep.subr.mxu0 0.0
    %1405 = vmatpush2.msra.mxu0 0.0
    %1406 = vmatprep.subr.mxu0 0.0
    %1407 = vmatpush2.msra.mxu0 0.0
    %1408 = vmatprep.subr.mxu0 0.0
    %1409 = vmatpush2.msra.mxu0 0.0
    %1410 = vmatprep.subr.mxu0 0.0
    %1411 = vmatpush2.msra.mxu0 0.0
    %1412 = vmatprep.subr.mxu0 0.0
    %1413 = vmatpush2.msra.mxu0 0.0
    %1414 = vmatprep.subr.mxu0 0.0
    %1415 = vmatpush2.msra.mxu0 0.0
    %1416 = vmatprep.subr.mxu0 0.0
    %1417 = vmatpush2.msra.mxu0 0.0
    %1418 = vmatprep.subr.mxu0 0.0
    %1419 = vmatpush2.msra.mxu0 0.0
    %1420 = vmatprep.subr.mxu0 0.0
    %1421 = vmatpush2.msra.mxu0 0.0
    %1422 = vmatprep.subr.mxu0 0.0
    %1423 = vmatpush2.msra.mxu0 0.0
    %1424 = vmatprep.subr.mxu0 0.0
    %1425 = vmatpush2.msra.mxu0 0.0
    %1426 = vmatprep.subr.mxu0 0.0
    %1427 = vmatpush2.msra.mxu0 0.0
    %1428 = vmatprep.subr.mxu0 0.0
    %1429 = vmatpush2.msra.mxu0 0.0
    %1430 = vmatprep.subr.mxu0 0.0
    %1431 = vmatpush2.msra.mxu0 0.0
    %1432 = vmatprep.mubr.f32.mxu0 0.0
    %1433 = vmatmul.mubr.f32.gmra.mxu0 %v203
    %v1434 = vpop.f32.mrf.mxu0
    %v1435 = vadd.f32 %v101, %v1434
    %v1436 = vpop.f32.mrf.mxu0
    %1437 = vmatprep.mubr.f32.mxu0 0.0
    %1438 = vmatmul.mubr.f32.gmra.mxu0 %v206
    %v1439 = vpop.f32.mrf.mxu0
    %v1440 = vadd.f32 %v105, %v1439
    %v1441 = vpop.f32.mrf.mxu0
    %1442 = vmatprep.mubr.f32.mxu0 0.0
    %1443 = vmatmul.mubr.f32.gmra.mxu0 %v209
    %v1444 = vpop.f32.mrf.mxu0
    %v1445 = vadd.f32 %v109, %v1444
    %v1446 = vpop.f32.mrf.mxu0
    %1447 = vmatprep.mubr.f32.mxu0 0.0
    %1448 = vmatmul.mubr.f32.gmra.mxu0 %v212
    %v1449 = vpop.f32.mrf.mxu0
    %v1450 = vadd.f32 %v113, %v1449
    %v1451 = vpop.f32.mrf.mxu0
    %1452 = vmatprep.mubr.f32.mxu0 0.0
    %1453 = vmatmul.mubr.f32.gmra.mxu0 %v215
    %v1454 = vpop.f32.mrf.mxu0
    %v1455 = vadd.f32 %v117, %v1454
    %v1456 = vpop.f32.mrf.mxu0
    %1457 = vmatprep.mubr.f32.mxu0 0.0
    %1458 = vmatmul.mubr.f32.gmra.mxu0 %v218
    %v1459 = vpop.f32.mrf.mxu0
    %v1460 = vadd.f32 %v121, %v1459
    %v1461 = vpop.f32.mrf.mxu0
    %1462 = vmatprep.mubr.f32.mxu0 0.0
    %1463 = vmatmul.mubr.f32.gmra.mxu0 %v221
    %v1464 = vpop.f32.mrf.mxu0
    %v1465 = vadd.f32 %v125, %v1464
    %v1466 = vpop.f32.mrf.mxu0
    %1467 = vmatprep.mubr.f32.mxu0 0.0
    %1468 = vmatmul.mubr.f32.gmra.mxu0 %v224
    %v1469 = vpop.f32.mrf.mxu0
    %v1470 = vadd.f32 %v129, %v1469
    %v1471 = vpop.f32.mrf.mxu0
    %1472 = vdwg.mxu0
    %v1473 = vmax.f32 %v1435, 0.0
    %v1474 = vmax.f32 %v1440, 0.0
    %v1475 = vmax.f32 %v1445, 0.0
    %v1476 = vmax.f32 %v1450, 0.0
    %v1477 = vmax.f32 %v1455, 0.0
    %v1478 = vmax.f32 %v1460, 0.0
    %v1479 = vmax.f32 %v1465, 0.0
    %v1480 = vmax.f32 %v1470, 0.0
    %v1481 = vmul.f32 %v1473, %v133
    %v1482 = vmul.f32 %v1474, %v137
    %v1483 = vmul.f32 %v1475, %v141
    %v1484 = vmul.f32 %v1476, %v145
    %v1485 = vmul.f32 %v1477, %v149
    %v1486 = vmul.f32 %v1478, %v153
    %v1487 = vmul.f32 %v1479, %v157
    %v1488 = vmul.f32 %v1480, %v161
    %v1489 = vadd.f32 %v1481, %v1482
    %v1490 = vadd.f32 %v1489, %v1483
    %v1491 = vadd.f32 %v1490, %v1484
    %v1492 = vadd.f32 %v1491, %v1485
    %v1493 = vadd.f32 %v1492, %v1486
    %v1494 = vadd.f32 %v1493, %v1487
    %v1495 = vadd.f32 %v1494, %v1488
    %v1496 = vrot.slane %v1495, 4
    %v1497 = vadd.f32 %v1495, %v1496
    %v1498 = vrot.slane %v1497, 2
    %v1499 = vadd.f32 %v1497, %v1498
    %v1500 = vrot.slane %v1499, 1
    %v1501 = vadd.f32 %v1499, %v1500
    %v1502 = vadd.f32 %v1501, %v360
    %vm1503 = vcmask 1040384
    %v1504 = vsel %vm1503, %v361, %v524
    %vm1505 = vcmask 1041408
    %v1506 = vsel %vm1505, %v1504, %v687
    %vm1507 = vcmask 1042432
    %v1508 = vsel %vm1507, %v1506, %v850
    %vm1509 = vcmask 1043456
    %v1510 = vsel %vm1509, %v1508, %v1013
    %vm1511 = vcmask 1044480
    %v1512 = vsel %vm1511, %v1510, %v1176
    %vm1513 = vcmask 1045504
    %v1514 = vsel %vm1513, %v1512, %v1339
    %vm1515 = vcmask 1046528
    %v1516 = vsel %vm1515, %v1514, %v1502
    %1517 = vst [vmem:[#allocation3] sm:$0xff] %v1516
    // Predicated region
    $region18: #{tpu_custom_call.1} parent=1 // pred_check
      _
    $region19: #{tpu_custom_call.1} parent=1 // pred_check_branch
      %1519 = sbr.rel (0) target = $region21
    $region20: #{tpu_custom_call.1} parent=1 // pred_region
      %s1521 = ssub.s32 128, 128
      %1522 = vsyncadd [#allocation4], %s1521
      %s1524 = sshll.u32 [#allocation3], 4
      %s1525 = int_to_ptr.vmem [resolvable:$true] %s1524
      %1527 = dma.vmem_to_hbm [thread:$0]  %s1525, 128, %s4, [#allocation4]
    $region21: #{tpu_custom_call.1} parent=1 // pred_fallthru
      _
    // Predicated region
    $region22: #{tpu_custom_call.1} parent=1 // pred_check
      _
    $region23: #{tpu_custom_call.1} parent=1 // pred_check_branch
      %1529 = sbr.rel (0) target = $region25
    $region24: #{tpu_custom_call.1} parent=1 // pred_region
      %1530 = dma.done [#allocation4], 128
    $region25: #{tpu_custom_call.1} parent=1 // pred_fallthru
      _
    %1531 = vsyncpa [#allocation4], 1

</llo_original>
